<compile_context>
chip_gen: v5e
topology: v5e:2x2
jax: 0.10.0
libtpu: 0.0.40
codegen_flags: <defaults>
</compile_context>

<pallas_src>
import jax
import jax.numpy as jnp
import numpy as np
from jax import lax
from jax.experimental import pallas as pl
from jax.experimental.pallas import tpu as pltpu


# ------------------------------ Pallas kernel ------------------------------ #

def _shift_rows(x, d):
    """y[r] = x[r - d] along rows (sublanes), zero-filled at the top.  d static."""
    r, c = x.shape
    if d <= 0:
        return x
    if d >= r:
        return jnp.zeros_like(x)
    return jnp.concatenate([jnp.zeros((d, c), x.dtype), x[: r - d, :]], axis=0)


def _row_time_index(rows, t_len):
    """Per-row time index within its sequence (rows are sequence-major: r = s*T + t).

    Avoids vector integer div/rem: bitwise AND for power-of-two T, otherwise a
    float-reciprocal floor trick (exact for the row counts used here).
    """
    r = lax.broadcasted_iota(jnp.int32, (rows, 1), 0)
    if t_len & (t_len - 1) == 0:
        return r & (t_len - 1)
    q = jnp.floor((r.astype(jnp.float32) + 0.5) * (1.0 / t_len)).astype(jnp.int32)
    return r - q * t_len


def _make_fused_kernel(layer_cfg, t_len):
    """layer_cfg: static tuple of (dilation, has_downsample, cout_p) per block."""
    n_layers = len(layer_cfg)

    def kernel(x_ref, *refs):
        lrefs = refs[: 5 * n_layers]
        wf1_ref, bf1_ref, wf2_ref, bf2_ref, o_ref, act_ref = refs[5 * n_layers:]

        rows = x_ref.shape[0]
        nb = o_ref.shape[0]                         # sequences in this tile (static)
        t_idx = _row_time_index(rows, t_len)        # (rows, 1) int32

        h = x_ref[...]                              # (rows, cin_p) bf16
        for li, (d, has_ds, cout_p) in enumerate(layer_cfg):
            w1 = lrefs[5 * li + 0][...]
            b1 = lrefs[5 * li + 1][...]
            w2a = lrefs[5 * li + 2][...]
            w2b = lrefs[5 * li + 3][...]
            b2 = lrefs[5 * li + 4][...]
            keep = t_idx >= d                       # causal: x[t-d] exists iff t >= d

            # conv1 + chomp1 + relu1 (+ fused 1x1 downsample): one MXU matmul with
            # K = 2*Cin and output columns [conv1 | downsample].
            hprev = jnp.where(keep, _shift_rows(h, d), jnp.zeros_like(h))
            big = jnp.dot(jnp.concatenate([hprev, h], axis=1), w1,
                          preferred_element_type=jnp.float32) + b1
            if has_ds:
                h1 = jnp.maximum(big[:, :cout_p], 0.0)     # dropout1 = identity (eval)
                res = big[:, cout_p:]                      # downsample(x) + its bias
            else:
                h1 = jnp.maximum(big, 0.0)                 # dropout1 = identity (eval)
                res = h.astype(jnp.float32)                # identity residual

            # conv2 + chomp2 + relu2: two matmuls summed (no lane-concat copy).
            h1b = h1.astype(jnp.bfloat16)
            h1prev = jnp.where(keep, _shift_rows(h1b, d), jnp.zeros_like(h1b))
            h2 = (jnp.dot(h1prev, w2a, preferred_element_type=jnp.float32)
                  + jnp.dot(h1b, w2b, preferred_element_type=jnp.float32) + b2)
            h2 = jnp.maximum(h2, 0.0)                      # dropout2 = identity (eval)

            h = jnp.maximum(h2 + res, 0.0).astype(jnp.bfloat16)

        # FC head on each sequence's last time step (TCN_out[:, -1, :]): stage the
        # final activations in a VMEM scratch and pull row t = T-1 of every sequence
        # with a strided sublane read, then fc1 -> relu -> fc2.
        act_ref[...] = h.astype(jnp.float32)
        h_last = act_ref[pl.ds(t_len - 1, nb, stride=t_len), :].astype(jnp.bfloat16)
        z = jnp.dot(h_last, wf1_ref[...], preferred_element_type=jnp.float32) + bf1_ref[...]
        z = jnp.maximum(z, 0.0).astype(jnp.bfloat16)       # head dropout = identity
        o_ref[...] = (jnp.dot(z, wf2_ref[...], preferred_element_type=jnp.float32)
                      + bf2_ref[...]).astype(o_ref.dtype)

    return kernel


# -------------------------------- glue (JAX) -------------------------------- #

def _pick_seqs_per_tile(n, t):
    """Whole sequences per grid step.

    Targets ~2048 activation rows per step (sweep 2048-4096), keeps >=2 grid
    steps so v7x's two TensorCores both get work, and keeps every block's row
    count a multiple of 8 (or full-extent) to satisfy the (8, 128) tiling rule.
    """
    nb = max(1, min(n, max(1, 2048 // max(t, 1))))
    if nb == n and n > 1:
        nb = -(-n // 2)                      # cap at ceil(N/2): >=2 parallel steps
    if nb < n:
        nb = -(-nb // 8) * 8                 # output block rows must be 8-aligned
        if nb >= n:
            nb = n                           # else fall back to one full-extent tile
    return nb


def _vmem_limit_bytes():
    """~75% of physical VMEM (headroom on v7x's 64 MiB), capped at 64 MiB."""
    try:
        cap = int(pltpu.get_tpu_info().vmem_capacity_bytes)
        return min(cap * 3 // 4, 64 * 1024 * 1024)
    except Exception:
        return 48 * 1024 * 1024


def decoder_tcn_forward(x_tcn, x_lengths, params):
    """x_tcn: (N, T, CNN_embed_dim).  x_lengths is unused, as in the PyTorch forward."""
    del x_lengths
    n, t, c_in = x_tcn.shape
    tcn, head = params["tcn"], params["head"]
    cin_p = tcn[0]["cin_p"]
    cout_last = tcn[-1]["cout_p"]
    nc_p = head["w2"].shape[1]

    # One-time lane pad of the input; everything downstream stays inside the kernel.
    x = jnp.pad(x_tcn.astype(jnp.bfloat16), ((0, 0), (0, 0), (0, cin_p - c_in)))
    x2d = x.reshape(n * t, cin_p)

    nb = _pick_seqs_per_tile(n, t)
    rows = nb * t
    layer_cfg = tuple((2 ** li, p["has_ds"], p["cout_p"]) for li, p in enumerate(tcn))

    inputs = [x2d]
    in_specs = [pl.BlockSpec((rows, cin_p), lambda i: (i, 0))]
    for p in tcn:                                   # all weights VMEM-resident
        for name in ("w1", "b1", "w2a", "w2b", "b2"):
            arr = p[name]
            inputs.append(arr)
            in_specs.append(pl.BlockSpec(arr.shape, lambda i: (0, 0)))
    for name in ("w1", "b1", "w2", "b2"):
        arr = head[name]
        inputs.append(arr)
        in_specs.append(pl.BlockSpec(arr.shape, lambda i: (0, 0)))

    logits_padded = pl.pallas_call(
        _make_fused_kernel(layer_cfg, t),
        out_shape=jax.ShapeDtypeStruct((n, nc_p), jnp.float32),
        grid=(pl.cdiv(n, nb),),
        in_specs=in_specs,
        out_specs=pl.BlockSpec((nb, nc_p), lambda i: (i, 0)),
        scratch_shapes=[pltpu.VMEM((rows, cout_last), jnp.float32)],
        compiler_params=pltpu.CompilerParams(
            dimension_semantics=("parallel",),
            vmem_limit_bytes=_vmem_limit_bytes()),
    )(*inputs)
    return logits_padded[:, : head["num_classes"]]


# -------------------------------- parameters -------------------------------- #

def _round_up(x, m):
    return ((x + m - 1) // m) * m


def _weight_norm(v, g):
    # torch weight_norm (dim=0): w = g * v / ||v||, norm over all dims except 0.
    norm = jnp.sqrt(jnp.sum(v * v, axis=(1, 2), keepdims=True))
    return g[:, None, None] * v / norm


def init_params(key, cnn_embed_dim, num_channels, h_fc_dim, num_classes):
    def nxt():
        nonlocal key
        key, sub = jax.random.split(key)
        return sub

    params = {"tcn": []}
    in_c = cnn_embed_dim
    for out_c in num_channels:
        cin_p, cout_p = _round_up(in_c, 128), _round_up(out_c, 128)
        has_ds = in_c != out_c
        p = {"in_c": in_c, "out_c": out_c, "cin_p": cin_p, "cout_p": cout_p,
             "has_ds": has_ds}

        def make_conv(ci):
            v = 0.01 * jax.random.normal(nxt(), (out_c, ci, 2), jnp.float32)
            g = 1.0 + 0.05 * jax.random.normal(nxt(), (out_c,), jnp.float32)
            w = _weight_norm(v, g)                          # (out_c, ci, 2) OIK
            b = 0.01 * jax.random.normal(nxt(), (out_c,), jnp.float32)
            return w, b

        w1, b1 = make_conv(in_c)
        w2, b2 = make_conv(out_c)
        p["_conv1_w_oik"], p["_conv1_b"] = w1, b1
        p["_conv2_w_oik"], p["_conv2_b"] = w2, b2

        # conv1 (+ optional fused 1x1 downsample): tap-stacked (2*cin_p, ncol).
        # Rows [0:cin_p) multiply x[t-d], rows [cin_p:2*cin_p) multiply x[t].
        # Output cols [0:cout_p) = conv1, [cout_p:2*cout_p) = downsample
        # (fills the 256-wide MXU output dim).  Padded rows/cols are zero.
        ncol = 2 * cout_p if has_ds else cout_p
        w1cat = jnp.zeros((2 * cin_p, ncol), jnp.float32)
        w1cat = w1cat.at[:in_c, :out_c].set(w1[:, :, 0].T)
        w1cat = w1cat.at[cin_p:cin_p + in_c, :out_c].set(w1[:, :, 1].T)
        b1cat = jnp.zeros((1, ncol), jnp.float32).at[0, :out_c].set(b1)
        if has_ds:
            wds = 0.01 * jax.random.normal(nxt(), (out_c, in_c, 1), jnp.float32)
            bds = 0.01 * jax.random.normal(nxt(), (out_c,), jnp.float32)
            p["_ds_w_oik"], p["_ds_b"] = wds, bds
            w1cat = w1cat.at[cin_p:cin_p + in_c, cout_p:cout_p + out_c].set(wds[:, :, 0].T)
            b1cat = b1cat.at[0, cout_p:cout_p + out_c].set(bds)
        p["w1"] = w1cat.astype(jnp.bfloat16)
        p["b1"] = b1cat

        # conv2 as two per-tap matrices (kernel sums two dots; no concat copy).
        def tap(w, k):
            m = jnp.zeros((cout_p, cout_p), jnp.float32).at[:out_c, :out_c].set(w[:, :, k].T)
            return m.astype(jnp.bfloat16)
        p["w2a"], p["w2b"] = tap(w2, 0), tap(w2, 1)
        p["b2"] = jnp.zeros((1, cout_p), jnp.float32).at[0, :out_c].set(b2)

        params["tcn"].append(p)
        in_c = out_c

    c_p = _round_up(in_c, 128)
    h_p = _round_up(h_fc_dim, 128)
    nc_p = _round_up(num_classes, 128)
    w1 = 0.1 * jax.random.normal(nxt(), (in_c, h_fc_dim), jnp.float32)
    b1 = 0.01 * jax.random.normal(nxt(), (h_fc_dim,), jnp.float32)
    w2 = 0.1 * jax.random.normal(nxt(), (h_fc_dim, num_classes), jnp.float32)
    b2 = 0.01 * jax.random.normal(nxt(), (num_classes,), jnp.float32)
    params["head"] = {
        "num_classes": num_classes,
        "w1": jnp.zeros((c_p, h_p), jnp.float32).at[:in_c, :h_fc_dim].set(w1).astype(jnp.bfloat16),
        "b1": jnp.zeros((1, h_p), jnp.float32).at[0, :h_fc_dim].set(b1),
        "w2": jnp.zeros((h_p, nc_p), jnp.float32).at[:h_fc_dim, :num_classes].set(w2).astype(jnp.bfloat16),
        "b2": jnp.zeros((1, nc_p), jnp.float32).at[0, :num_classes].set(b2),
        "_w1": w1, "_b1": b1, "_w2": w2, "_b2": b2,
    }
    return params


# ------------------------- pure-JAX reference (check) ------------------------ #

def ref_forward(x_tcn, params):
    x = jnp.transpose(x_tcn, (0, 2, 1)).astype(jnp.float32)     # (N, C, T) like PyTorch
    dn = ("NCH", "OIH", "NCH")
    for i, p in enumerate(params["tcn"]):
        d = 2 ** i
        pad = d                                                  # (kernel_size - 1) * d

        def conv(inp, w, b):
            y = lax.conv_general_dilated(inp, w, (1,), [(pad, pad)],
                                         rhs_dilation=(d,), dimension_numbers=dn)
            return y[:, :, :-pad] + b[None, :, None]             # Chomp1d + bias

        out = jax.nn.relu(conv(x, p["_conv1_w_oik"], p["_conv1_b"]))
        out = jax.nn.relu(conv(out, p["_conv2_w_oik"], p["_conv2_b"]))
        if "_ds_w_oik" in p:
            res = lax.conv_general_dilated(x, p["_ds_w_oik"], (1,), [(0, 0)],
                                           dimension_numbers=dn) + p["_ds_b"][None, :, None]
        else:
            res = x
        x = jax.nn.relu(out + res)
    tcn_out = jnp.transpose(x, (0, 2, 1))                        # (N, T, C)
    head = params["head"]
    h = jax.nn.relu(tcn_out[:, -1, :] @ head["_w1"] + head["_b1"])
    return h @ head["_w2"] + head["_b2"]


# ----------------------------------- main ------------------------------------ #

if __name__ == "__main__":
    N, T = 2, 8
    CNN_EMBED_DIM = 64
    NUM_CHANNELS = [32, 32, 32]        # 3 levels -> dilations 1, 2, 4
    H_FC_DIM = 16
    NUM_CLASSES = 8

    key = jax.random.PRNGKey(0)
    pkey, xkey = jax.random.split(key)
    params = init_params(pkey, CNN_EMBED_DIM, NUM_CHANNELS, H_FC_DIM, NUM_CLASSES)

    x_tcn = jax.random.normal(xkey, (N, T, CNN_EMBED_DIM), jnp.float32)
    x_lengths = jnp.full((N,), T, jnp.int32)

    fwd = jax.jit(lambda x, l: decoder_tcn_forward(x, l, params))
    out = jax.block_until_ready(fwd(x_tcn, x_lengths))

    ref = ref_forward(x_tcn, params)
    # bf16 MXU inputs with f32 accumulation -> loosened tolerances vs f32 reference
    np.testing.assert_allclose(np.asarray(out), np.asarray(ref), rtol=5e-2, atol=2e-2)
    assert out.shape == (N, NUM_CLASSES)
    print("KERNEL_OK")
</pallas_src>

<mosaic_0001>
module attributes {stable_mosaic.version = 11 : i64} {
  func.func @kernel(%arg0: i32, %arg1: memref<16x128xbf16, #tpu.memory_space<vmem>>, %arg2: memref<256x256xbf16, #tpu.memory_space<vmem>>, %arg3: memref<1x256xf32, #tpu.memory_space<vmem>>, %arg4: memref<128x128xbf16, #tpu.memory_space<vmem>>, %arg5: memref<128x128xbf16, #tpu.memory_space<vmem>>, %arg6: memref<1x128xf32, #tpu.memory_space<vmem>>, %arg7: memref<256x128xbf16, #tpu.memory_space<vmem>>, %arg8: memref<1x128xf32, #tpu.memory_space<vmem>>, %arg9: memref<128x128xbf16, #tpu.memory_space<vmem>>, %arg10: memref<128x128xbf16, #tpu.memory_space<vmem>>, %arg11: memref<1x128xf32, #tpu.memory_space<vmem>>, %arg12: memref<256x128xbf16, #tpu.memory_space<vmem>>, %arg13: memref<1x128xf32, #tpu.memory_space<vmem>>, %arg14: memref<128x128xbf16, #tpu.memory_space<vmem>>, %arg15: memref<128x128xbf16, #tpu.memory_space<vmem>>, %arg16: memref<1x128xf32, #tpu.memory_space<vmem>>, %arg17: memref<128x128xbf16, #tpu.memory_space<vmem>>, %arg18: memref<1x128xf32, #tpu.memory_space<vmem>>, %arg19: memref<128x128xbf16, #tpu.memory_space<vmem>>, %arg20: memref<1x128xf32, #tpu.memory_space<vmem>>, %arg21: memref<2x128xf32, #tpu.memory_space<vmem>>, %arg22: memref<16x128xf32, #tpu.memory_space<vmem>>) attributes {dimension_semantics = [#tpu.dimension_semantics<parallel>], iteration_bounds = array<i64: 1>, scalar_prefetch = 0 : i64, scratch_operands = 1 : i64, tpu.core_type = #tpu.core_type<tc>, window_params = [{transform_indices = @transform_0, window_bounds = array<i64: 16, 128>}, {pipeline_mode = #tpu.pipeline_mode<synchronous>, transform_indices = @transform_1, window_bounds = array<i64: 256, 256>}, {pipeline_mode = #tpu.pipeline_mode<synchronous>, transform_indices = @transform_2, window_bounds = array<i64: 1, 256>}, {pipeline_mode = #tpu.pipeline_mode<synchronous>, transform_indices = @transform_3, window_bounds = array<i64: 128, 128>}, {pipeline_mode = #tpu.pipeline_mode<synchronous>, transform_indices = @transform_4, window_bounds = array<i64: 128, 128>}, {pipeline_mode = #tpu.pipeline_mode<synchronous>, transform_indices = @transform_5, window_bounds = array<i64: 1, 128>}, {pipeline_mode = #tpu.pipeline_mode<synchronous>, transform_indices = @transform_6, window_bounds = array<i64: 256, 128>}, {pipeline_mode = #tpu.pipeline_mode<synchronous>, transform_indices = @transform_7, window_bounds = array<i64: 1, 128>}, {pipeline_mode = #tpu.pipeline_mode<synchronous>, transform_indices = @transform_8, window_bounds = array<i64: 128, 128>}, {pipeline_mode = #tpu.pipeline_mode<synchronous>, transform_indices = @transform_9, window_bounds = array<i64: 128, 128>}, {pipeline_mode = #tpu.pipeline_mode<synchronous>, transform_indices = @transform_10, window_bounds = array<i64: 1, 128>}, {pipeline_mode = #tpu.pipeline_mode<synchronous>, transform_indices = @transform_11, window_bounds = array<i64: 256, 128>}, {pipeline_mode = #tpu.pipeline_mode<synchronous>, transform_indices = @transform_12, window_bounds = array<i64: 1, 128>}, {pipeline_mode = #tpu.pipeline_mode<synchronous>, transform_indices = @transform_13, window_bounds = array<i64: 128, 128>}, {pipeline_mode = #tpu.pipeline_mode<synchronous>, transform_indices = @transform_14, window_bounds = array<i64: 128, 128>}, {pipeline_mode = #tpu.pipeline_mode<synchronous>, transform_indices = @transform_15, window_bounds = array<i64: 1, 128>}, {pipeline_mode = #tpu.pipeline_mode<synchronous>, transform_indices = @transform_16, window_bounds = array<i64: 128, 128>}, {pipeline_mode = #tpu.pipeline_mode<synchronous>, transform_indices = @transform_17, window_bounds = array<i64: 1, 128>}, {pipeline_mode = #tpu.pipeline_mode<synchronous>, transform_indices = @transform_18, window_bounds = array<i64: 128, 128>}, {pipeline_mode = #tpu.pipeline_mode<synchronous>, transform_indices = @transform_19, window_bounds = array<i64: 1, 128>}, {transform_indices = @transform_20, window_bounds = array<i64: 2, 128>}]} {
    %0 = tpu.iota {dimensions = array<i32: 0>} : vector<16x1xi32>
    %c7_i32 = arith.constant 7 : i32
    %1 = vector.broadcast %c7_i32 : i32 to vector<16x1xi32>
    %2 = arith.andi %0, %1 : vector<16x1xi32>
    %c0 = arith.constant 0 : index
    %c0_0 = arith.constant 0 : index
    %3 = vector.load %arg1[%c0, %c0_0] : memref<16x128xbf16, #tpu.memory_space<vmem>>, vector<16x128xbf16>
    %c0_1 = arith.constant 0 : index
    %c0_2 = arith.constant 0 : index
    %4 = vector.load %arg2[%c0_1, %c0_2] : memref<256x256xbf16, #tpu.memory_space<vmem>>, vector<256x256xbf16>
    %c0_3 = arith.constant 0 : index
    %c0_4 = arith.constant 0 : index
    %5 = vector.load %arg3[%c0_3, %c0_4] : memref<1x256xf32, #tpu.memory_space<vmem>>, vector<1x256xf32>
    %c0_5 = arith.constant 0 : index
    %c0_6 = arith.constant 0 : index
    %6 = vector.load %arg4[%c0_5, %c0_6] : memref<128x128xbf16, #tpu.memory_space<vmem>>, vector<128x128xbf16>
    %c0_7 = arith.constant 0 : index
    %c0_8 = arith.constant 0 : index
    %7 = vector.load %arg5[%c0_7, %c0_8] : memref<128x128xbf16, #tpu.memory_space<vmem>>, vector<128x128xbf16>
    %c0_9 = arith.constant 0 : index
    %c0_10 = arith.constant 0 : index
    %8 = vector.load %arg6[%c0_9, %c0_10] : memref<1x128xf32, #tpu.memory_space<vmem>>, vector<1x128xf32>
    %c1_i32 = arith.constant 1 : i32
    %9 = vector.broadcast %c1_i32 : i32 to vector<16x1xi32>
    %10 = arith.cmpi sge, %2, %9 : vector<16x1xi32>
    %cst = arith.constant 0.000000e+00 : bf16
    %11 = vector.broadcast %cst : bf16 to vector<1x128xbf16>
    %12 = vector.extract_strided_slice %3 {offsets = [0, 0], sizes = [15, 128], strides = [1, 1]} : vector<16x128xbf16> to vector<15x128xbf16>
    %13 = tpu.concatenate %11, %12 in 0 : vector<1x128xbf16>, vector<15x128xbf16> -> vector<16x128xbf16>
    %cst_11 = arith.constant 0.000000e+00 : bf16
    %14 = vector.broadcast %cst_11 : bf16 to vector<16x128xbf16>
    %15 = vector.shape_cast %10 : vector<16x1xi1> to vector<16x1xi1>
    %16 = vector.broadcast %15 : vector<16x1xi1> to vector<16x128xi1>
    %17 = arith.select %16, %13, %14 : vector<16x128xi1>, vector<16x128xbf16>
    %18 = tpu.concatenate %17, %3 in 1 : vector<16x128xbf16>, vector<16x128xbf16> -> vector<16x256xbf16>
    %cst_12 = arith.constant dense<0.000000e+00> : vector<16x256xf32>
    %19 = tpu.matmul %18, %4, %cst_12 {dimension_numbers = #tpu.dot_dimension_numbers<[1], [0], [0], [1], [0, 0, 1, 1], [], []>} : vector<16x256xbf16>, vector<256x256xbf16>, vector<16x256xf32> -> vector<16x256xf32>
    %20 = vector.broadcast %5 : vector<1x256xf32> to vector<16x256xf32>
    %21 = arith.addf %19, %20 : vector<16x256xf32>
    %22 = vector.extract_strided_slice %21 {offsets = [0, 0], sizes = [16, 128], strides = [1, 1]} : vector<16x256xf32> to vector<16x128xf32>
    %cst_13 = arith.constant 0.000000e+00 : f32
    %23 = vector.broadcast %cst_13 : f32 to vector<16x128xf32>
    %24 = arith.maximumf %22, %23 : vector<16x128xf32>
    %25 = vector.extract_strided_slice %21 {offsets = [0, 128], sizes = [16, 128], strides = [1, 1]} : vector<16x256xf32> to vector<16x128xf32>
    %26 = arith.truncf %24 : vector<16x128xf32> to vector<16x128xbf16>
    %cst_14 = arith.constant 0.000000e+00 : bf16
    %27 = vector.broadcast %cst_14 : bf16 to vector<1x128xbf16>
    %28 = vector.extract_strided_slice %26 {offsets = [0, 0], sizes = [15, 128], strides = [1, 1]} : vector<16x128xbf16> to vector<15x128xbf16>
    %29 = tpu.concatenate %27, %28 in 0 : vector<1x128xbf16>, vector<15x128xbf16> -> vector<16x128xbf16>
    %cst_15 = arith.constant 0.000000e+00 : bf16
    %30 = vector.broadcast %cst_15 : bf16 to vector<16x128xbf16>
    %31 = vector.shape_cast %10 : vector<16x1xi1> to vector<16x1xi1>
    %32 = vector.broadcast %31 : vector<16x1xi1> to vector<16x128xi1>
    %33 = arith.select %32, %29, %30 : vector<16x128xi1>, vector<16x128xbf16>
    %cst_16 = arith.constant dense<0.000000e+00> : vector<16x128xf32>
    %34 = tpu.matmul %33, %6, %cst_16 {dimension_numbers = #tpu.dot_dimension_numbers<[1], [0], [0], [1], [0, 0, 1, 1], [], []>} : vector<16x128xbf16>, vector<128x128xbf16>, vector<16x128xf32> -> vector<16x128xf32>
    %cst_17 = arith.constant dense<0.000000e+00> : vector<16x128xf32>
    %35 = tpu.matmul %26, %7, %cst_17 {dimension_numbers = #tpu.dot_dimension_numbers<[1], [0], [0], [1], [0, 0, 1, 1], [], []>} : vector<16x128xbf16>, vector<128x128xbf16>, vector<16x128xf32> -> vector<16x128xf32>
    %36 = arith.addf %34, %35 : vector<16x128xf32>
    %37 = vector.broadcast %8 : vector<1x128xf32> to vector<16x128xf32>
    %38 = arith.addf %36, %37 : vector<16x128xf32>
    %cst_18 = arith.constant 0.000000e+00 : f32
    %39 = vector.broadcast %cst_18 : f32 to vector<16x128xf32>
    %40 = arith.maximumf %38, %39 : vector<16x128xf32>
    %41 = arith.addf %40, %25 : vector<16x128xf32>
    %cst_19 = arith.constant 0.000000e+00 : f32
    %42 = vector.broadcast %cst_19 : f32 to vector<16x128xf32>
    %43 = arith.maximumf %41, %42 : vector<16x128xf32>
    %44 = arith.truncf %43 : vector<16x128xf32> to vector<16x128xbf16>
    %c0_20 = arith.constant 0 : index
    %c0_21 = arith.constant 0 : index
    %45 = vector.load %arg7[%c0_20, %c0_21] : memref<256x128xbf16, #tpu.memory_space<vmem>>, vector<256x128xbf16>
    %c0_22 = arith.constant 0 : index
    %c0_23 = arith.constant 0 : index
    %46 = vector.load %arg8[%c0_22, %c0_23] : memref<1x128xf32, #tpu.memory_space<vmem>>, vector<1x128xf32>
    %c0_24 = arith.constant 0 : index
    %c0_25 = arith.constant 0 : index
    %47 = vector.load %arg9[%c0_24, %c0_25] : memref<128x128xbf16, #tpu.memory_space<vmem>>, vector<128x128xbf16>
    %c0_26 = arith.constant 0 : index
    %c0_27 = arith.constant 0 : index
    %48 = vector.load %arg10[%c0_26, %c0_27] : memref<128x128xbf16, #tpu.memory_space<vmem>>, vector<128x128xbf16>
    %c0_28 = arith.constant 0 : index
    %c0_29 = arith.constant 0 : index
    %49 = vector.load %arg11[%c0_28, %c0_29] : memref<1x128xf32, #tpu.memory_space<vmem>>, vector<1x128xf32>
    %c2_i32 = arith.constant 2 : i32
    %50 = vector.broadcast %c2_i32 : i32 to vector<16x1xi32>
    %51 = arith.cmpi sge, %2, %50 : vector<16x1xi32>
    %cst_30 = arith.constant 0.000000e+00 : bf16
    %52 = vector.broadcast %cst_30 : bf16 to vector<2x128xbf16>
    %53 = vector.extract_strided_slice %44 {offsets = [0, 0], sizes = [14, 128], strides = [1, 1]} : vector<16x128xbf16> to vector<14x128xbf16>
    %54 = tpu.concatenate %52, %53 in 0 : vector<2x128xbf16>, vector<14x128xbf16> -> vector<16x128xbf16>
    %cst_31 = arith.constant 0.000000e+00 : bf16
    %55 = vector.broadcast %cst_31 : bf16 to vector<16x128xbf16>
    %56 = vector.shape_cast %51 : vector<16x1xi1> to vector<16x1xi1>
    %57 = vector.broadcast %56 : vector<16x1xi1> to vector<16x128xi1>
    %58 = arith.select %57, %54, %55 : vector<16x128xi1>, vector<16x128xbf16>
    %59 = tpu.concatenate %58, %44 in 1 : vector<16x128xbf16>, vector<16x128xbf16> -> vector<16x256xbf16>
    %cst_32 = arith.constant dense<0.000000e+00> : vector<16x128xf32>
    %60 = tpu.matmul %59, %45, %cst_32 {dimension_numbers = #tpu.dot_dimension_numbers<[1], [0], [0], [1], [0, 0, 1, 1], [], []>} : vector<16x256xbf16>, vector<256x128xbf16>, vector<16x128xf32> -> vector<16x128xf32>
    %61 = vector.broadcast %46 : vector<1x128xf32> to vector<16x128xf32>
    %62 = arith.addf %60, %61 : vector<16x128xf32>
    %cst_33 = arith.constant 0.000000e+00 : f32
    %63 = vector.broadcast %cst_33 : f32 to vector<16x128xf32>
    %64 = arith.maximumf %62, %63 : vector<16x128xf32>
    %65 = arith.extf %44 : vector<16x128xbf16> to vector<16x128xf32>
    %66 = arith.truncf %64 : vector<16x128xf32> to vector<16x128xbf16>
    %cst_34 = arith.constant 0.000000e+00 : bf16
    %67 = vector.broadcast %cst_34 : bf16 to vector<2x128xbf16>
    %68 = vector.extract_strided_slice %66 {offsets = [0, 0], sizes = [14, 128], strides = [1, 1]} : vector<16x128xbf16> to vector<14x128xbf16>
    %69 = tpu.concatenate %67, %68 in 0 : vector<2x128xbf16>, vector<14x128xbf16> -> vector<16x128xbf16>
    %cst_35 = arith.constant 0.000000e+00 : bf16
    %70 = vector.broadcast %cst_35 : bf16 to vector<16x128xbf16>
    %71 = vector.shape_cast %51 : vector<16x1xi1> to vector<16x1xi1>
    %72 = vector.broadcast %71 : vector<16x1xi1> to vector<16x128xi1>
    %73 = arith.select %72, %69, %70 : vector<16x128xi1>, vector<16x128xbf16>
    %cst_36 = arith.constant dense<0.000000e+00> : vector<16x128xf32>
    %74 = tpu.matmul %73, %47, %cst_36 {dimension_numbers = #tpu.dot_dimension_numbers<[1], [0], [0], [1], [0, 0, 1, 1], [], []>} : vector<16x128xbf16>, vector<128x128xbf16>, vector<16x128xf32> -> vector<16x128xf32>
    %cst_37 = arith.constant dense<0.000000e+00> : vector<16x128xf32>
    %75 = tpu.matmul %66, %48, %cst_37 {dimension_numbers = #tpu.dot_dimension_numbers<[1], [0], [0], [1], [0, 0, 1, 1], [], []>} : vector<16x128xbf16>, vector<128x128xbf16>, vector<16x128xf32> -> vector<16x128xf32>
    %76 = arith.addf %74, %75 : vector<16x128xf32>
    %77 = vector.broadcast %49 : vector<1x128xf32> to vector<16x128xf32>
    %78 = arith.addf %76, %77 : vector<16x128xf32>
    %cst_38 = arith.constant 0.000000e+00 : f32
    %79 = vector.broadcast %cst_38 : f32 to vector<16x128xf32>
    %80 = arith.maximumf %78, %79 : vector<16x128xf32>
    %81 = arith.addf %80, %65 : vector<16x128xf32>
    %cst_39 = arith.constant 0.000000e+00 : f32
    %82 = vector.broadcast %cst_39 : f32 to vector<16x128xf32>
    %83 = arith.maximumf %81, %82 : vector<16x128xf32>
    %84 = arith.truncf %83 : vector<16x128xf32> to vector<16x128xbf16>
    %c0_40 = arith.constant 0 : index
    %c0_41 = arith.constant 0 : index
    %85 = vector.load %arg12[%c0_40, %c0_41] : memref<256x128xbf16, #tpu.memory_space<vmem>>, vector<256x128xbf16>
    %c0_42 = arith.constant 0 : index
    %c0_43 = arith.constant 0 : index
    %86 = vector.load %arg13[%c0_42, %c0_43] : memref<1x128xf32, #tpu.memory_space<vmem>>, vector<1x128xf32>
    %c0_44 = arith.constant 0 : index
    %c0_45 = arith.constant 0 : index
    %87 = vector.load %arg14[%c0_44, %c0_45] : memref<128x128xbf16, #tpu.memory_space<vmem>>, vector<128x128xbf16>
    %c0_46 = arith.constant 0 : index
    %c0_47 = arith.constant 0 : index
    %88 = vector.load %arg15[%c0_46, %c0_47] : memref<128x128xbf16, #tpu.memory_space<vmem>>, vector<128x128xbf16>
    %c0_48 = arith.constant 0 : index
    %c0_49 = arith.constant 0 : index
    %89 = vector.load %arg16[%c0_48, %c0_49] : memref<1x128xf32, #tpu.memory_space<vmem>>, vector<1x128xf32>
    %c4_i32 = arith.constant 4 : i32
    %90 = vector.broadcast %c4_i32 : i32 to vector<16x1xi32>
    %91 = arith.cmpi sge, %2, %90 : vector<16x1xi32>
    %cst_50 = arith.constant 0.000000e+00 : bf16
    %92 = vector.broadcast %cst_50 : bf16 to vector<4x128xbf16>
    %93 = vector.extract_strided_slice %84 {offsets = [0, 0], sizes = [12, 128], strides = [1, 1]} : vector<16x128xbf16> to vector<12x128xbf16>
    %94 = tpu.concatenate %92, %93 in 0 : vector<4x128xbf16>, vector<12x128xbf16> -> vector<16x128xbf16>
    %cst_51 = arith.constant 0.000000e+00 : bf16
    %95 = vector.broadcast %cst_51 : bf16 to vector<16x128xbf16>
    %96 = vector.shape_cast %91 : vector<16x1xi1> to vector<16x1xi1>
    %97 = vector.broadcast %96 : vector<16x1xi1> to vector<16x128xi1>
    %98 = arith.select %97, %94, %95 : vector<16x128xi1>, vector<16x128xbf16>
    %99 = tpu.concatenate %98, %84 in 1 : vector<16x128xbf16>, vector<16x128xbf16> -> vector<16x256xbf16>
    %cst_52 = arith.constant dense<0.000000e+00> : vector<16x128xf32>
    %100 = tpu.matmul %99, %85, %cst_52 {dimension_numbers = #tpu.dot_dimension_numbers<[1], [0], [0], [1], [0, 0, 1, 1], [], []>} : vector<16x256xbf16>, vector<256x128xbf16>, vector<16x128xf32> -> vector<16x128xf32>
    %101 = vector.broadcast %86 : vector<1x128xf32> to vector<16x128xf32>
    %102 = arith.addf %100, %101 : vector<16x128xf32>
    %cst_53 = arith.constant 0.000000e+00 : f32
    %103 = vector.broadcast %cst_53 : f32 to vector<16x128xf32>
    %104 = arith.maximumf %102, %103 : vector<16x128xf32>
    %105 = arith.extf %84 : vector<16x128xbf16> to vector<16x128xf32>
    %106 = arith.truncf %104 : vector<16x128xf32> to vector<16x128xbf16>
    %cst_54 = arith.constant 0.000000e+00 : bf16
    %107 = vector.broadcast %cst_54 : bf16 to vector<4x128xbf16>
    %108 = vector.extract_strided_slice %106 {offsets = [0, 0], sizes = [12, 128], strides = [1, 1]} : vector<16x128xbf16> to vector<12x128xbf16>
    %109 = tpu.concatenate %107, %108 in 0 : vector<4x128xbf16>, vector<12x128xbf16> -> vector<16x128xbf16>
    %cst_55 = arith.constant 0.000000e+00 : bf16
    %110 = vector.broadcast %cst_55 : bf16 to vector<16x128xbf16>
    %111 = vector.shape_cast %91 : vector<16x1xi1> to vector<16x1xi1>
    %112 = vector.broadcast %111 : vector<16x1xi1> to vector<16x128xi1>
    %113 = arith.select %112, %109, %110 : vector<16x128xi1>, vector<16x128xbf16>
    %cst_56 = arith.constant dense<0.000000e+00> : vector<16x128xf32>
    %114 = tpu.matmul %113, %87, %cst_56 {dimension_numbers = #tpu.dot_dimension_numbers<[1], [0], [0], [1], [0, 0, 1, 1], [], []>} : vector<16x128xbf16>, vector<128x128xbf16>, vector<16x128xf32> -> vector<16x128xf32>
    %cst_57 = arith.constant dense<0.000000e+00> : vector<16x128xf32>
    %115 = tpu.matmul %106, %88, %cst_57 {dimension_numbers = #tpu.dot_dimension_numbers<[1], [0], [0], [1], [0, 0, 1, 1], [], []>} : vector<16x128xbf16>, vector<128x128xbf16>, vector<16x128xf32> -> vector<16x128xf32>
    %116 = arith.addf %114, %115 : vector<16x128xf32>
    %117 = vector.broadcast %89 : vector<1x128xf32> to vector<16x128xf32>
    %118 = arith.addf %116, %117 : vector<16x128xf32>
    %cst_58 = arith.constant 0.000000e+00 : f32
    %119 = vector.broadcast %cst_58 : f32 to vector<16x128xf32>
    %120 = arith.maximumf %118, %119 : vector<16x128xf32>
    %121 = arith.addf %120, %105 : vector<16x128xf32>
    %cst_59 = arith.constant 0.000000e+00 : f32
    %122 = vector.broadcast %cst_59 : f32 to vector<16x128xf32>
    %123 = arith.maximumf %121, %122 : vector<16x128xf32>
    %124 = arith.truncf %123 : vector<16x128xf32> to vector<16x128xbf16>
    %125 = arith.extf %124 : vector<16x128xbf16> to vector<16x128xf32>
    %c0_60 = arith.constant 0 : index
    %c0_61 = arith.constant 0 : index
    %126 = vector.load %arg22[%c0_60, %c0_61] : memref<16x128xf32, #tpu.memory_space<vmem>>, vector<16x128xf32>
    tpu.vector_store %arg22[%c0_60, %c0_61], %125 {strides = array<i32>} : memref<16x128xf32, #tpu.memory_space<vmem>>, vector<16x128xf32>,
    %c7 = arith.constant 7 : index
    %c0_62 = arith.constant 0 : index
    %127 = tpu.strided_load %arg22[%c7, %c0_62] {strides = array<i32: 8, 1>} : memref<16x128xf32, #tpu.memory_space<vmem>>, vector<2x128xf32>
    %128 = arith.truncf %127 : vector<2x128xf32> to vector<2x128xbf16>
    %c0_63 = arith.constant 0 : index
    %c0_64 = arith.constant 0 : index
    %129 = vector.load %arg17[%c0_63, %c0_64] : memref<128x128xbf16, #tpu.memory_space<vmem>>, vector<128x128xbf16>
    %cst_65 = arith.constant dense<0.000000e+00> : vector<2x128xf32>
    %130 = tpu.matmul %128, %129, %cst_65 {dimension_numbers = #tpu.dot_dimension_numbers<[1], [0], [0], [1], [0, 0, 1, 1], [], []>} : vector<2x128xbf16>, vector<128x128xbf16>, vector<2x128xf32> -> vector<2x128xf32>
    %c0_66 = arith.constant 0 : index
    %c0_67 = arith.constant 0 : index
    %131 = vector.load %arg18[%c0_66, %c0_67] : memref<1x128xf32, #tpu.memory_space<vmem>>, vector<1x128xf32>
    %132 = vector.broadcast %131 : vector<1x128xf32> to vector<2x128xf32>
    %133 = arith.addf %130, %132 : vector<2x128xf32>
    %cst_68 = arith.constant 0.000000e+00 : f32
    %134 = vector.broadcast %cst_68 : f32 to vector<2x128xf32>
    %135 = arith.maximumf %133, %134 : vector<2x128xf32>
    %136 = arith.truncf %135 : vector<2x128xf32> to vector<2x128xbf16>
    %c0_69 = arith.constant 0 : index
    %c0_70 = arith.constant 0 : index
    %137 = vector.load %arg19[%c0_69, %c0_70] : memref<128x128xbf16, #tpu.memory_space<vmem>>, vector<128x128xbf16>
    %cst_71 = arith.constant dense<0.000000e+00> : vector<2x128xf32>
    %138 = tpu.matmul %136, %137, %cst_71 {dimension_numbers = #tpu.dot_dimension_numbers<[1], [0], [0], [1], [0, 0, 1, 1], [], []>} : vector<2x128xbf16>, vector<128x128xbf16>, vector<2x128xf32> -> vector<2x128xf32>
    %c0_72 = arith.constant 0 : index
    %c0_73 = arith.constant 0 : index
    %139 = vector.load %arg20[%c0_72, %c0_73] : memref<1x128xf32, #tpu.memory_space<vmem>>, vector<1x128xf32>
    %140 = vector.broadcast %139 : vector<1x128xf32> to vector<2x128xf32>
    %141 = arith.addf %138, %140 : vector<2x128xf32>
    %c0_74 = arith.constant 0 : index
    %c0_75 = arith.constant 0 : index
    %142 = vector.load %arg21[%c0_74, %c0_75] : memref<2x128xf32, #tpu.memory_space<vmem>>, vector<2x128xf32>
    tpu.vector_store %arg21[%c0_74, %c0_75], %141 {strides = array<i32>} : memref<2x128xf32, #tpu.memory_space<vmem>>, vector<2x128xf32>,
    return
  }
  func.func @transform_0(%arg0: i32) -> (i32, i32) {
    %c0_i32 = arith.constant 0 : i32
    %c0_i32_0 = arith.constant 0 : i32
    return %arg0, %c0_i32 : i32, i32
  }
  func.func @transform_1(%arg0: i32) -> (i32, i32) {
    %c0_i32 = arith.constant 0 : i32
    %c0_i32_0 = arith.constant 0 : i32
    %c0_i32_1 = arith.constant 0 : i32
    return %c0_i32, %c0_i32_0 : i32, i32
  }
  func.func @transform_2(%arg0: i32) -> (i32, i32) {
    %c0_i32 = arith.constant 0 : i32
    %c0_i32_0 = arith.constant 0 : i32
    %c0_i32_1 = arith.constant 0 : i32
    return %c0_i32, %c0_i32_0 : i32, i32
  }
  func.func @transform_3(%arg0: i32) -> (i32, i32) {
    %c0_i32 = arith.constant 0 : i32
    %c0_i32_0 = arith.constant 0 : i32
    %c0_i32_1 = arith.constant 0 : i32
    return %c0_i32, %c0_i32_0 : i32, i32
  }
  func.func @transform_4(%arg0: i32) -> (i32, i32) {
    %c0_i32 = arith.constant 0 : i32
    %c0_i32_0 = arith.constant 0 : i32
    %c0_i32_1 = arith.constant 0 : i32
    return %c0_i32, %c0_i32_0 : i32, i32
  }
  func.func @transform_5(%arg0: i32) -> (i32, i32) {
    %c0_i32 = arith.constant 0 : i32
    %c0_i32_0 = arith.constant 0 : i32
    %c0_i32_1 = arith.constant 0 : i32
    return %c0_i32, %c0_i32_0 : i32, i32
  }
  func.func @transform_6(%arg0: i32) -> (i32, i32) {
    %c0_i32 = arith.constant 0 : i32
    %c0_i32_0 = arith.constant 0 : i32
    %c0_i32_1 = arith.constant 0 : i32
    return %c0_i32, %c0_i32_0 : i32, i32
  }
  func.func @transform_7(%arg0: i32) -> (i32, i32) {
    %c0_i32 = arith.constant 0 : i32
    %c0_i32_0 = arith.constant 0 : i32
    %c0_i32_1 = arith.constant 0 : i32
    return %c0_i32, %c0_i32_0 : i32, i32
  }
  func.func @transform_8(%arg0: i32) -> (i32, i32) {
    %c0_i32 = arith.constant 0 : i32
    %c0_i32_0 = arith.constant 0 : i32
    %c0_i32_1 = arith.constant 0 : i32
    return %c0_i32, %c0_i32_0 : i32, i32
  }
  func.func @transform_9(%arg0: i32) -> (i32, i32) {
    %c0_i32 = arith.constant 0 : i32
    %c0_i32_0 = arith.constant 0 : i32
    %c0_i32_1 = arith.constant 0 : i32
    return %c0_i32, %c0_i32_0 : i32, i32
  }
  func.func @transform_10(%arg0: i32) -> (i32, i32) {
    %c0_i32 = arith.constant 0 : i32
    %c0_i32_0 = arith.constant 0 : i32
    %c0_i32_1 = arith.constant 0 : i32
    return %c0_i32, %c0_i32_0 : i32, i32
  }
  func.func @transform_11(%arg0: i32) -> (i32, i32) {
    %c0_i32 = arith.constant 0 : i32
    %c0_i32_0 = arith.constant 0 : i32
    %c0_i32_1 = arith.constant 0 : i32
    return %c0_i32, %c0_i32_0 : i32, i32
  }
  func.func @transform_12(%arg0: i32) -> (i32, i32) {
    %c0_i32 = arith.constant 0 : i32
    %c0_i32_0 = arith.constant 0 : i32
    %c0_i32_1 = arith.constant 0 : i32
    return %c0_i32, %c0_i32_0 : i32, i32
  }
  func.func @transform_13(%arg0: i32) -> (i32, i32) {
    %c0_i32 = arith.constant 0 : i32
    %c0_i32_0 = arith.constant 0 : i32
    %c0_i32_1 = arith.constant 0 : i32
    return %c0_i32, %c0_i32_0 : i32, i32
  }
  func.func @transform_14(%arg0: i32) -> (i32, i32) {
    %c0_i32 = arith.constant 0 : i32
    %c0_i32_0 = arith.constant 0 : i32
    %c0_i32_1 = arith.constant 0 : i32
    return %c0_i32, %c0_i32_0 : i32, i32
  }
  func.func @transform_15(%arg0: i32) -> (i32, i32) {
    %c0_i32 = arith.constant 0 : i32
    %c0_i32_0 = arith.constant 0 : i32
    %c0_i32_1 = arith.constant 0 : i32
    return %c0_i32, %c0_i32_0 : i32, i32
  }
  func.func @transform_16(%arg0: i32) -> (i32, i32) {
    %c0_i32 = arith.constant 0 : i32
    %c0_i32_0 = arith.constant 0 : i32
    %c0_i32_1 = arith.constant 0 : i32
    return %c0_i32, %c0_i32_0 : i32, i32
  }
  func.func @transform_17(%arg0: i32) -> (i32, i32) {
    %c0_i32 = arith.constant 0 : i32
    %c0_i32_0 = arith.constant 0 : i32
    %c0_i32_1 = arith.constant 0 : i32
    return %c0_i32, %c0_i32_0 : i32, i32
  }
  func.func @transform_18(%arg0: i32) -> (i32, i32) {
    %c0_i32 = arith.constant 0 : i32
    %c0_i32_0 = arith.constant 0 : i32
    %c0_i32_1 = arith.constant 0 : i32
    return %c0_i32, %c0_i32_0 : i32, i32
  }
  func.func @transform_19(%arg0: i32) -> (i32, i32) {
    %c0_i32 = arith.constant 0 : i32
    %c0_i32_0 = arith.constant 0 : i32
    %c0_i32_1 = arith.constant 0 : i32
    return %c0_i32, %c0_i32_0 : i32, i32
  }
  func.func @transform_20(%arg0: i32) -> (i32, i32) {
    %c0_i32 = arith.constant 0 : i32
    %c0_i32_0 = arith.constant 0 : i32
    return %arg0, %c0_i32 : i32, i32
  }
}

</mosaic_0001>

<llo_original>
// kernel: _lambda_.1
$region0: #{_lambda_.1}
  #allocation0 [shape = 'u32[]', space=smem, size = 0x4, offset = 0x4, fixed_abs, tag = 'smem constant byte address 0x4 - core index']
  #allocation1 [shape = 'u32[72,128]{1,0:T(1,128)}', space=vmem, size = 0x9000, scoped, tag = 'internal scratch']
  #allocation2 [shape = 'f32[16,128]{1,0:T(8,128)}', space=vmem, size = 0x2000, scoped, tag = 'scratch operand']
  %s0 = inlined_call_operand.vmem [shape: bf16[16,128], index: 0, kind: input, shape index: {}]
  %s1 = inlined_call_operand.hbm [shape: bf16[256,256], index: 1, kind: input, shape index: {}]
  %s2 = inlined_call_operand.vmem [shape: f32[1,256], index: 2, kind: input, shape index: {}]
  %s3 = inlined_call_operand.hbm [shape: bf16[128,128], index: 3, kind: input, shape index: {}]
  %s4 = inlined_call_operand.hbm [shape: bf16[128,128], index: 4, kind: input, shape index: {}]
  %s5 = inlined_call_operand.vmem [shape: f32[1,128], index: 5, kind: input, shape index: {}]
  %s6 = inlined_call_operand.hbm [shape: bf16[256,128], index: 6, kind: input, shape index: {}]
  %s7 = inlined_call_operand.vmem [shape: f32[1,128], index: 7, kind: input, shape index: {}]
  %s8 = inlined_call_operand.hbm [shape: bf16[128,128], index: 8, kind: input, shape index: {}]
  %s9 = inlined_call_operand.hbm [shape: bf16[128,128], index: 9, kind: input, shape index: {}]
  %s10 = inlined_call_operand.vmem [shape: f32[1,128], index: 10, kind: input, shape index: {}]
  %s11 = inlined_call_operand.hbm [shape: bf16[256,128], index: 11, kind: input, shape index: {}]
  %s12 = inlined_call_operand.vmem [shape: f32[1,128], index: 12, kind: input, shape index: {}]
  %s13 = inlined_call_operand.hbm [shape: bf16[128,128], index: 13, kind: input, shape index: {}]
  %s14 = inlined_call_operand.hbm [shape: bf16[128,128], index: 14, kind: input, shape index: {}]
  %s15 = inlined_call_operand.vmem [shape: f32[1,128], index: 15, kind: input, shape index: {}]
  %s16 = inlined_call_operand.hbm [shape: bf16[128,128], index: 16, kind: input, shape index: {}]
  %s17 = inlined_call_operand.vmem [shape: f32[1,128], index: 17, kind: input, shape index: {}]
  %s18 = inlined_call_operand.hbm [shape: bf16[128,128], index: 18, kind: input, shape index: {}]
  %s19 = inlined_call_operand.vmem [shape: f32[1,128], index: 19, kind: input, shape index: {}]
  %s20 = inlined_call_operand.hbm [shape: f32[2,128], index: 20, kind: output, shape index: {}]
  %s21 = sld [smem:[#allocation0]]
  $region134: #{_lambda_.1} parent=0
    _
  %s23 = ssub.s32 1, %s21
  %s24 = scalar_select 0, %s23, %s21
  $region1: #{_lambda_.1} parent=0
    #allocation3 [shape = 'u8[131072]{0}', space=vmem, size = 0x20000, scoped, tag = 'input window, operand 1, single buffered']
    #allocation4 [shape = 's32[1]{0}', space=sflag, size = 0x4, scoped, tag = 'scoped memory for _lambda_.1']
    #allocation5 [shape = 's32[1]{0}', space=sflag, size = 0x4, scoped, tag = 'scoped memory for _lambda_.1']
    #allocation6 [shape = 'u8[32768]{0}', space=vmem, size = 0x8000, scoped, tag = 'input window, operand 3, single buffered']
    #allocation7 [shape = 's32[1]{0}', space=sflag, size = 0x4, scoped, tag = 'scoped memory for _lambda_.1']
    #allocation8 [shape = 'u8[32768]{0}', space=vmem, size = 0x8000, scoped, tag = 'input window, operand 4, single buffered']
    #allocation9 [shape = 'u8[65536]{0}', space=vmem, size = 0x10000, scoped, tag = 'input window, operand 6, single buffered']
    #allocation10 [shape = 's32[1]{0}', space=sflag, size = 0x4, scoped, tag = 'scoped memory for _lambda_.1']
    #allocation11 [shape = 'u8[32768]{0}', space=vmem, size = 0x8000, scoped, tag = 'input window, operand 8, single buffered']
    #allocation12 [shape = 'u8[32768]{0}', space=vmem, size = 0x8000, scoped, tag = 'input window, operand 9, single buffered']
    #allocation13 [shape = 's32[1]{0}', space=sflag, size = 0x4, scoped, tag = 'scoped memory for _lambda_.1']
    #allocation14 [shape = 'u8[65536]{0}', space=vmem, size = 0x10000, scoped, tag = 'input window, operand 11, single buffered']
    #allocation15 [shape = 'u8[32768]{0}', space=vmem, size = 0x8000, scoped, tag = 'input window, operand 13, single buffered']
    #allocation16 [shape = 's32[1]{0}', space=sflag, size = 0x4, scoped, tag = 'scoped memory for _lambda_.1']
    #allocation17 [shape = 'u8[32768]{0}', space=vmem, size = 0x8000, scoped, tag = 'input window, operand 14, single buffered']
    #allocation18 [shape = 'u8[32768]{0}', space=vmem, size = 0x8000, scoped, tag = 'input window, operand 16, single buffered']
    #allocation19 [shape = 's32[1]{0}', space=sflag, size = 0x4, scoped, tag = 'scoped memory for _lambda_.1']
    #allocation20 [shape = 'u8[32768]{0}', space=vmem, size = 0x8000, scoped, tag = 'input window, operand 18, single buffered']
    #allocation21 [shape = 'u8[1024]{0}', space=vmem, size = 0x400, scoped, tag = 'output window, operand 0, single buffered']
    %25 = vsyncpa [#allocation4], 0
    %26 = vsyncpa [#allocation7], 0
    %27 = vsyncpa [#allocation10], 0
    %28 = vsyncpa [#allocation13], 0
    %29 = vsyncpa [#allocation16], 0
    %30 = vsyncpa [#allocation19], 0
    %31 = vsyncpa [#allocation5], 0
    // Predicated region
    $region2: #{_lambda_.1} parent=1 // pred_check
      _
    $region3: #{_lambda_.1} parent=1 // pred_check_branch
      %33 = sbr.rel (0) target = $region5
    $region4: #{_lambda_.1} parent=1 // pred_region
      _
    $region5: #{_lambda_.1} parent=1 // pred_fallthru
      _
    // Predicated region
    $region6: #{_lambda_.1} parent=1 // pred_check
      _
    $region7: #{_lambda_.1} parent=1 // pred_check_branch
      %35 = sbr.rel (0) target = $region9
    $region8: #{_lambda_.1} parent=1 // pred_region
      %37 = vsyncadd [#allocation4], 0
      %s38 = sshll.u32 %s1, 4
      %s39 = int_to_ptr.hbm [resolvable:$true] %s38
      %s40 = sshll.u32 [#allocation3], 4
      %s41 = int_to_ptr.vmem [resolvable:$true] %s40
      %46 = dma.hbm_to_vmem [thread:$0]  %s39, 4096, %s41, [#allocation4], 128, 128, 8
    $region9: #{_lambda_.1} parent=1 // pred_fallthru
      _
    // Predicated region
    $region10: #{_lambda_.1} parent=1 // pred_check
      _
    $region11: #{_lambda_.1} parent=1 // pred_check_branch
      %48 = sbr.rel (0) target = $region13
    $region12: #{_lambda_.1} parent=1 // pred_region
      _
    $region13: #{_lambda_.1} parent=1 // pred_fallthru
      _
    // Predicated region
    $region14: #{_lambda_.1} parent=1 // pred_check
      _
    $region15: #{_lambda_.1} parent=1 // pred_check_branch
      %50 = sbr.rel (0) target = $region17
    $region16: #{_lambda_.1} parent=1 // pred_region
      %52 = vsyncadd [#allocation7], 0
      %s53 = sshll.u32 %s3, 4
      %s54 = int_to_ptr.hbm [resolvable:$true] %s53
      %s55 = sshll.u32 [#allocation6], 4
      %s56 = int_to_ptr.vmem [resolvable:$true] %s55
      %61 = dma.hbm_to_vmem [thread:$0]  %s54, 1024, %s56, [#allocation7], 64, 64, 4
    $region17: #{_lambda_.1} parent=1 // pred_fallthru
      _
    // Predicated region
    $region18: #{_lambda_.1} parent=1 // pred_check
      _
    $region19: #{_lambda_.1} parent=1 // pred_check_branch
      %63 = sbr.rel (0) target = $region21
    $region20: #{_lambda_.1} parent=1 // pred_region
      %65 = vsyncadd [#allocation7], 0
      %s66 = sshll.u32 %s4, 4
      %s67 = int_to_ptr.hbm [resolvable:$true] %s66
      %s68 = sshll.u32 [#allocation8], 4
      %s69 = int_to_ptr.vmem [resolvable:$true] %s68
      %74 = dma.hbm_to_vmem [thread:$0]  %s67, 1024, %s69, [#allocation7], 64, 64, 4
    $region21: #{_lambda_.1} parent=1 // pred_fallthru
      _
    // Predicated region
    $region22: #{_lambda_.1} parent=1 // pred_check
      _
    $region23: #{_lambda_.1} parent=1 // pred_check_branch
      %76 = sbr.rel (0) target = $region25
    $region24: #{_lambda_.1} parent=1 // pred_region
      _
    $region25: #{_lambda_.1} parent=1 // pred_fallthru
      _
    // Predicated region
    $region26: #{_lambda_.1} parent=1 // pred_check
      _
    $region27: #{_lambda_.1} parent=1 // pred_check_branch
      %78 = sbr.rel (0) target = $region29
    $region28: #{_lambda_.1} parent=1 // pred_region
      %80 = vsyncadd [#allocation10], 0
      %s81 = sshll.u32 %s6, 4
      %s82 = int_to_ptr.hbm [resolvable:$true] %s81
      %s83 = sshll.u32 [#allocation9], 4
      %s84 = int_to_ptr.vmem [resolvable:$true] %s83
      %89 = dma.hbm_to_vmem [thread:$0]  %s82, 2048, %s84, [#allocation10], 64, 64, 4
    $region29: #{_lambda_.1} parent=1 // pred_fallthru
      _
    // Predicated region
    $region30: #{_lambda_.1} parent=1 // pred_check
      _
    $region31: #{_lambda_.1} parent=1 // pred_check_branch
      %91 = sbr.rel (0) target = $region33
    $region32: #{_lambda_.1} parent=1 // pred_region
      _
    $region33: #{_lambda_.1} parent=1 // pred_fallthru
      _
    // Predicated region
    $region34: #{_lambda_.1} parent=1 // pred_check
      _
    $region35: #{_lambda_.1} parent=1 // pred_check_branch
      %93 = sbr.rel (0) target = $region37
    $region36: #{_lambda_.1} parent=1 // pred_region
      %95 = vsyncadd [#allocation10], 0
      %s96 = sshll.u32 %s8, 4
      %s97 = int_to_ptr.hbm [resolvable:$true] %s96
      %s98 = sshll.u32 [#allocation11], 4
      %s99 = int_to_ptr.vmem [resolvable:$true] %s98
      %104 = dma.hbm_to_vmem [thread:$0]  %s97, 1024, %s99, [#allocation10], 64, 64, 4
    $region37: #{_lambda_.1} parent=1 // pred_fallthru
      _
    // Predicated region
    $region38: #{_lambda_.1} parent=1 // pred_check
      _
    $region39: #{_lambda_.1} parent=1 // pred_check_branch
      %106 = sbr.rel (0) target = $region41
    $region40: #{_lambda_.1} parent=1 // pred_region
      %108 = vsyncadd [#allocation13], 0
      %s109 = sshll.u32 %s9, 4
      %s110 = int_to_ptr.hbm [resolvable:$true] %s109
      %s111 = sshll.u32 [#allocation12], 4
      %s112 = int_to_ptr.vmem [resolvable:$true] %s111
      %117 = dma.hbm_to_vmem [thread:$0]  %s110, 1024, %s112, [#allocation13], 64, 64, 4
    $region41: #{_lambda_.1} parent=1 // pred_fallthru
      _
    // Predicated region
    $region42: #{_lambda_.1} parent=1 // pred_check
      _
    $region43: #{_lambda_.1} parent=1 // pred_check_branch
      %119 = sbr.rel (0) target = $region45
    $region44: #{_lambda_.1} parent=1 // pred_region
      _
    $region45: #{_lambda_.1} parent=1 // pred_fallthru
      _
    // Predicated region
    $region46: #{_lambda_.1} parent=1 // pred_check
      _
    $region47: #{_lambda_.1} parent=1 // pred_check_branch
      %121 = sbr.rel (0) target = $region49
    $region48: #{_lambda_.1} parent=1 // pred_region
      %123 = vsyncadd [#allocation13], 0
      %s124 = sshll.u32 %s11, 4
      %s125 = int_to_ptr.hbm [resolvable:$true] %s124
      %s126 = sshll.u32 [#allocation14], 4
      %s127 = int_to_ptr.vmem [resolvable:$true] %s126
      %132 = dma.hbm_to_vmem [thread:$0]  %s125, 2048, %s127, [#allocation13], 64, 64, 4
    $region49: #{_lambda_.1} parent=1 // pred_fallthru
      _
    // Predicated region
    $region50: #{_lambda_.1} parent=1 // pred_check
      _
    $region51: #{_lambda_.1} parent=1 // pred_check_branch
      %134 = sbr.rel (0) target = $region53
    $region52: #{_lambda_.1} parent=1 // pred_region
      _
    $region53: #{_lambda_.1} parent=1 // pred_fallthru
      _
    // Predicated region
    $region54: #{_lambda_.1} parent=1 // pred_check
      _
    $region55: #{_lambda_.1} parent=1 // pred_check_branch
      %136 = sbr.rel (0) target = $region57
    $region56: #{_lambda_.1} parent=1 // pred_region
      %138 = vsyncadd [#allocation16], 0
      %s139 = sshll.u32 %s13, 4
      %s140 = int_to_ptr.hbm [resolvable:$true] %s139
      %s141 = sshll.u32 [#allocation15], 4
      %s142 = int_to_ptr.vmem [resolvable:$true] %s141
      %147 = dma.hbm_to_vmem [thread:$0]  %s140, 1024, %s142, [#allocation16], 64, 64, 4
    $region57: #{_lambda_.1} parent=1 // pred_fallthru
      _
    // Predicated region
    $region58: #{_lambda_.1} parent=1 // pred_check
      _
    $region59: #{_lambda_.1} parent=1 // pred_check_branch
      %149 = sbr.rel (0) target = $region61
    $region60: #{_lambda_.1} parent=1 // pred_region
      %151 = vsyncadd [#allocation16], 0
      %s152 = sshll.u32 %s14, 4
      %s153 = int_to_ptr.hbm [resolvable:$true] %s152
      %s154 = sshll.u32 [#allocation17], 4
      %s155 = int_to_ptr.vmem [resolvable:$true] %s154
      %160 = dma.hbm_to_vmem [thread:$0]  %s153, 1024, %s155, [#allocation16], 64, 64, 4
    $region61: #{_lambda_.1} parent=1 // pred_fallthru
      _
    // Predicated region
    $region62: #{_lambda_.1} parent=1 // pred_check
      _
    $region63: #{_lambda_.1} parent=1 // pred_check_branch
      %162 = sbr.rel (0) target = $region65
    $region64: #{_lambda_.1} parent=1 // pred_region
      _
    $region65: #{_lambda_.1} parent=1 // pred_fallthru
      _
    // Predicated region
    $region66: #{_lambda_.1} parent=1 // pred_check
      _
    $region67: #{_lambda_.1} parent=1 // pred_check_branch
      %164 = sbr.rel (0) target = $region69
    $region68: #{_lambda_.1} parent=1 // pred_region
      %166 = vsyncadd [#allocation19], 0
      %s167 = sshll.u32 %s16, 4
      %s168 = int_to_ptr.hbm [resolvable:$true] %s167
      %s169 = sshll.u32 [#allocation18], 4
      %s170 = int_to_ptr.vmem [resolvable:$true] %s169
      %175 = dma.hbm_to_vmem [thread:$0]  %s168, 1024, %s170, [#allocation19], 64, 64, 4
    $region69: #{_lambda_.1} parent=1 // pred_fallthru
      _
    // Predicated region
    $region70: #{_lambda_.1} parent=1 // pred_check
      _
    $region71: #{_lambda_.1} parent=1 // pred_check_branch
      %177 = sbr.rel (0) target = $region73
    $region72: #{_lambda_.1} parent=1 // pred_region
      _
    $region73: #{_lambda_.1} parent=1 // pred_fallthru
      _
    // Predicated region
    $region74: #{_lambda_.1} parent=1 // pred_check
      _
    $region75: #{_lambda_.1} parent=1 // pred_check_branch
      %179 = sbr.rel (0) target = $region77
    $region76: #{_lambda_.1} parent=1 // pred_region
      %181 = vsyncadd [#allocation19], 0
      %s182 = sshll.u32 %s18, 4
      %s183 = int_to_ptr.hbm [resolvable:$true] %s182
      %s184 = sshll.u32 [#allocation20], 4
      %s185 = int_to_ptr.vmem [resolvable:$true] %s184
      %190 = dma.hbm_to_vmem [thread:$0]  %s183, 1024, %s185, [#allocation19], 64, 64, 4
    $region77: #{_lambda_.1} parent=1 // pred_fallthru
      _
    // Predicated region
    $region78: #{_lambda_.1} parent=1 // pred_check
      _
    $region79: #{_lambda_.1} parent=1 // pred_check_branch
      %192 = sbr.rel (0) target = $region81
    $region80: #{_lambda_.1} parent=1 // pred_region
      _
    $region81: #{_lambda_.1} parent=1 // pred_fallthru
      _
    // Predicated region
    $region82: #{_lambda_.1} parent=1 // pred_check
      _
    $region83: #{_lambda_.1} parent=1 // pred_check_branch
      %194 = sbr.rel (0) target = $region85
    $region84: #{_lambda_.1} parent=1 // pred_region
      %196 = dma.done [#allocation4], 4096
    $region85: #{_lambda_.1} parent=1 // pred_fallthru
      _
    // Predicated region
    $region86: #{_lambda_.1} parent=1 // pred_check
      _
    $region87: #{_lambda_.1} parent=1 // pred_check_branch
      %198 = sbr.rel (0) target = $region89
    $region88: #{_lambda_.1} parent=1 // pred_region
      %200 = dma.done [#allocation7], 1024
    $region89: #{_lambda_.1} parent=1 // pred_fallthru
      _
    // Predicated region
    $region90: #{_lambda_.1} parent=1 // pred_check
      _
    $region91: #{_lambda_.1} parent=1 // pred_check_branch
      %202 = sbr.rel (0) target = $region93
    $region92: #{_lambda_.1} parent=1 // pred_region
      %204 = dma.done [#allocation7], 1024
    $region93: #{_lambda_.1} parent=1 // pred_fallthru
      _
    // Predicated region
    $region94: #{_lambda_.1} parent=1 // pred_check
      _
    $region95: #{_lambda_.1} parent=1 // pred_check_branch
      %206 = sbr.rel (0) target = $region97
    $region96: #{_lambda_.1} parent=1 // pred_region
      %208 = dma.done [#allocation10], 2048
    $region97: #{_lambda_.1} parent=1 // pred_fallthru
      _
    // Predicated region
    $region98: #{_lambda_.1} parent=1 // pred_check
      _
    $region99: #{_lambda_.1} parent=1 // pred_check_branch
      %210 = sbr.rel (0) target = $region101
    $region100: #{_lambda_.1} parent=1 // pred_region
      %212 = dma.done [#allocation10], 1024
    $region101: #{_lambda_.1} parent=1 // pred_fallthru
      _
    // Predicated region
    $region102: #{_lambda_.1} parent=1 // pred_check
      _
    $region103: #{_lambda_.1} parent=1 // pred_check_branch
      %214 = sbr.rel (0) target = $region105
    $region104: #{_lambda_.1} parent=1 // pred_region
      %216 = dma.done [#allocation13], 1024
    $region105: #{_lambda_.1} parent=1 // pred_fallthru
      _
    // Predicated region
    $region106: #{_lambda_.1} parent=1 // pred_check
      _
    $region107: #{_lambda_.1} parent=1 // pred_check_branch
      %218 = sbr.rel (0) target = $region109
    $region108: #{_lambda_.1} parent=1 // pred_region
      %220 = dma.done [#allocation13], 2048
    $region109: #{_lambda_.1} parent=1 // pred_fallthru
      _
    // Predicated region
    $region110: #{_lambda_.1} parent=1 // pred_check
      _
    $region111: #{_lambda_.1} parent=1 // pred_check_branch
      %222 = sbr.rel (0) target = $region113
    $region112: #{_lambda_.1} parent=1 // pred_region
      %224 = dma.done [#allocation16], 1024
    $region113: #{_lambda_.1} parent=1 // pred_fallthru
      _
    // Predicated region
    $region114: #{_lambda_.1} parent=1 // pred_check
      _
    $region115: #{_lambda_.1} parent=1 // pred_check_branch
      %226 = sbr.rel (0) target = $region117
    $region116: #{_lambda_.1} parent=1 // pred_region
      %228 = dma.done [#allocation16], 1024
    $region117: #{_lambda_.1} parent=1 // pred_fallthru
      _
    // Predicated region
    $region118: #{_lambda_.1} parent=1 // pred_check
      _
    $region119: #{_lambda_.1} parent=1 // pred_check_branch
      %230 = sbr.rel (0) target = $region121
    $region120: #{_lambda_.1} parent=1 // pred_region
      %232 = dma.done [#allocation19], 1024
    $region121: #{_lambda_.1} parent=1 // pred_fallthru
      _
    // Predicated region
    $region122: #{_lambda_.1} parent=1 // pred_check
      _
    $region123: #{_lambda_.1} parent=1 // pred_check_branch
      %234 = sbr.rel (0) target = $region125
    $region124: #{_lambda_.1} parent=1 // pred_region
      %236 = dma.done [#allocation19], 1024
    $region125: #{_lambda_.1} parent=1 // pred_fallthru
      _
    %v240 = vlaneseq
    %v241 = vshrl.u32 %v240, 7
    %v242 = vadd.s32 %v241, 8
    %v243 = vand.u32 %v241, 7
    %v244 = vand.u32 %v242, 7
    %v245 = vld [vmem:[%s0] sm:$0xf]
    %v246 = vld [vmem:[%s0 + $0x4] sm:$0xf]
    %v247 = vld [vmem:[#allocation3] sm:$0xff]
    %v248 = vld [vmem:[#allocation3 + $0x8] sm:$0xff]
    %v249 = vld [vmem:[#allocation3 + $0x10] sm:$0xff]
    %v250 = vld [vmem:[#allocation3 + $0x18] sm:$0xff]
    %v251 = vld [vmem:[#allocation3 + $0x20] sm:$0xff]
    %v252 = vld [vmem:[#allocation3 + $0x28] sm:$0xff]
    %v253 = vld [vmem:[#allocation3 + $0x30] sm:$0xff]
    %v254 = vld [vmem:[#allocation3 + $0x38] sm:$0xff]
    %v255 = vld [vmem:[#allocation3 + $0x40] sm:$0xff]
    %v256 = vld [vmem:[#allocation3 + $0x48] sm:$0xff]
    %v257 = vld [vmem:[#allocation3 + $0x50] sm:$0xff]
    %v258 = vld [vmem:[#allocation3 + $0x58] sm:$0xff]
    %v259 = vld [vmem:[#allocation3 + $0x60] sm:$0xff]
    %v260 = vld [vmem:[#allocation3 + $0x68] sm:$0xff]
    %v261 = vld [vmem:[#allocation3 + $0x70] sm:$0xff]
    %v262 = vld [vmem:[#allocation3 + $0x78] sm:$0xff]
    %v263 = vld [vmem:[#allocation3 + $0x80] sm:$0xff]
    %v264 = vld [vmem:[#allocation3 + $0x88] sm:$0xff]
    %v265 = vld [vmem:[#allocation3 + $0x90] sm:$0xff]
    %v266 = vld [vmem:[#allocation3 + $0x98] sm:$0xff]
    %v267 = vld [vmem:[#allocation3 + $0xa0] sm:$0xff]
    %v268 = vld [vmem:[#allocation3 + $0xa8] sm:$0xff]
    %v269 = vld [vmem:[#allocation3 + $0xb0] sm:$0xff]
    %v270 = vld [vmem:[#allocation3 + $0xb8] sm:$0xff]
    %v271 = vld [vmem:[#allocation3 + $0xc0] sm:$0xff]
    %v272 = vld [vmem:[#allocation3 + $0xc8] sm:$0xff]
    %v273 = vld [vmem:[#allocation3 + $0xd0] sm:$0xff]
    %v274 = vld [vmem:[#allocation3 + $0xd8] sm:$0xff]
    %v275 = vld [vmem:[#allocation3 + $0xe0] sm:$0xff]
    %v276 = vld [vmem:[#allocation3 + $0xe8] sm:$0xff]
    %v277 = vld [vmem:[#allocation3 + $0xf0] sm:$0xff]
    %v278 = vld [vmem:[#allocation3 + $0xf8] sm:$0xff]
    %v279 = vld [vmem:[%s2] sm:$0x3]
    %v280 = vld [vmem:[#allocation6] sm:$0xf]
    %v281 = vld [vmem:[#allocation6 + $0x4] sm:$0xf]
    %v282 = vld [vmem:[#allocation6 + $0x8] sm:$0xf]
    %v283 = vld [vmem:[#allocation6 + $0xc] sm:$0xf]
    %v284 = vld [vmem:[#allocation6 + $0x10] sm:$0xf]
    %v285 = vld [vmem:[#allocation6 + $0x14] sm:$0xf]
    %v286 = vld [vmem:[#allocation6 + $0x18] sm:$0xf]
    %v287 = vld [vmem:[#allocation6 + $0x1c] sm:$0xf]
    %v288 = vld [vmem:[#allocation6 + $0x20] sm:$0xf]
    %v289 = vld [vmem:[#allocation6 + $0x24] sm:$0xf]
    %v290 = vld [vmem:[#allocation6 + $0x28] sm:$0xf]
    %v291 = vld [vmem:[#allocation6 + $0x2c] sm:$0xf]
    %v292 = vld [vmem:[#allocation6 + $0x30] sm:$0xf]
    %v293 = vld [vmem:[#allocation6 + $0x34] sm:$0xf]
    %v294 = vld [vmem:[#allocation6 + $0x38] sm:$0xf]
    %v295 = vld [vmem:[#allocation6 + $0x3c] sm:$0xf]
    %v296 = vld [vmem:[#allocation8] sm:$0xf]
    %v297 = vld [vmem:[#allocation8 + $0x4] sm:$0xf]
    %v298 = vld [vmem:[#allocation8 + $0x8] sm:$0xf]
    %v299 = vld [vmem:[#allocation8 + $0xc] sm:$0xf]
    %v300 = vld [vmem:[#allocation8 + $0x10] sm:$0xf]
    %v301 = vld [vmem:[#allocation8 + $0x14] sm:$0xf]
    %v302 = vld [vmem:[#allocation8 + $0x18] sm:$0xf]
    %v303 = vld [vmem:[#allocation8 + $0x1c] sm:$0xf]
    %v304 = vld [vmem:[#allocation8 + $0x20] sm:$0xf]
    %v305 = vld [vmem:[#allocation8 + $0x24] sm:$0xf]
    %v306 = vld [vmem:[#allocation8 + $0x28] sm:$0xf]
    %v307 = vld [vmem:[#allocation8 + $0x2c] sm:$0xf]
    %v308 = vld [vmem:[#allocation8 + $0x30] sm:$0xf]
    %v309 = vld [vmem:[#allocation8 + $0x34] sm:$0xf]
    %v310 = vld [vmem:[#allocation8 + $0x38] sm:$0xf]
    %v311 = vld [vmem:[#allocation8 + $0x3c] sm:$0xf]
    %v312 = vld [vmem:[%s5] sm:$0x1]
    %vm313 = vcmp.ge.s32.totalorder %v243, 1
    %vm314 = vcmp.ge.s32.totalorder %v244, 1
    %v317 = vunpack.c.l.b16 %v245
    %v318 = vunpack.c.l.b16 %v246
    %v319 = vpack.c.b16 %v318, %v317
    %v321 = vshrl.u32 %v319, 16
    %v323 = vrot.slane %v321, 7
    %v324 = vshll.u32 %v319, 16
    %v326 = vor.u32 %v323, %v324
    %vm328 = vcmask 1040384
    %vm329 = vsmask.f32 256
    %vm330 = vmand %vm328, %vm329
    %v331 = vsel %vm330, 0, %v326
    %v332 = vsel %vm313, 1, 0
    %v333 = vsel %vm314, 1, 0
    %vm334 = vcmp.eq.s32.totalorder %v332, 1
    %vm335 = vcmp.eq.s32.totalorder %v333, 1
    %vm336 = vmpackc.low %vm334, %vm334
    %vm337 = vmpackc.low %vm335, %vm335
    %v338 = vsel %vm336, 65537, 0
    %v339 = vsel %vm337, 65537, 0
    %v340 = vunpack.c.l.b16 %v338
    %v341 = vunpack.c.l.b16 %v339
    %v342 = vpack.c.b16 %v341, %v340
    %v343 = vunpack.c.l.b16 %v342
    %v344 = vunpack.c.h.b16 %v342
    %v345 = vunpack.c.l.b16 0
    %v346 = vunpack.c.h.b16 0
    %vm347 = vcmp.ne.s32.totalorder %v343, %v345
    %vm348 = vcmp.ne.s32.totalorder %v344, %v346
    %vm349 = vmpackc.low %vm348, %vm347
    %v350 = vsel %vm349, %v331, 0
    %v353 = vperm.slane %v279, 0
    %v354 = vperm.slane %v279, 1
    %v389 = vunpack.c.l.b16 %v247
    %v390 = vunpack.c.h.b16 %v247
    %v391 = vunpack.c.l.b16 %v248
    %v392 = vunpack.c.h.b16 %v248
    %v393 = vunpack.c.l.b16 %v249
    %v394 = vunpack.c.h.b16 %v249
    %v395 = vunpack.c.l.b16 %v250
    %v396 = vunpack.c.h.b16 %v250
    %v397 = vunpack.c.l.b16 %v251
    %v398 = vunpack.c.h.b16 %v251
    %v399 = vunpack.c.l.b16 %v252
    %v400 = vunpack.c.h.b16 %v252
    %v401 = vunpack.c.l.b16 %v253
    %v402 = vunpack.c.h.b16 %v253
    %v403 = vunpack.c.l.b16 %v254
    %v404 = vunpack.c.h.b16 %v254
    %v405 = vunpack.c.l.b16 %v255
    %v406 = vunpack.c.h.b16 %v255
    %v407 = vunpack.c.l.b16 %v256
    %v408 = vunpack.c.h.b16 %v256
    %v409 = vunpack.c.l.b16 %v257
    %v410 = vunpack.c.h.b16 %v257
    %v411 = vunpack.c.l.b16 %v258
    %v412 = vunpack.c.h.b16 %v258
    %v413 = vunpack.c.l.b16 %v259
    %v414 = vunpack.c.h.b16 %v259
    %v415 = vunpack.c.l.b16 %v260
    %v416 = vunpack.c.h.b16 %v260
    %v417 = vunpack.c.l.b16 %v261
    %v418 = vunpack.c.h.b16 %v261
    %v419 = vunpack.c.l.b16 %v262
    %v420 = vunpack.c.h.b16 %v262
    %v421 = vunpack.c.l.b16 %v263
    %v422 = vunpack.c.h.b16 %v263
    %v423 = vunpack.c.l.b16 %v264
    %v424 = vunpack.c.h.b16 %v264
    %v425 = vunpack.c.l.b16 %v265
    %v426 = vunpack.c.h.b16 %v265
    %v427 = vunpack.c.l.b16 %v266
    %v428 = vunpack.c.h.b16 %v266
    %v429 = vunpack.c.l.b16 %v267
    %v430 = vunpack.c.h.b16 %v267
    %v431 = vunpack.c.l.b16 %v268
    %v432 = vunpack.c.h.b16 %v268
    %v433 = vunpack.c.l.b16 %v269
    %v434 = vunpack.c.h.b16 %v269
    %v435 = vunpack.c.l.b16 %v270
    %v436 = vunpack.c.h.b16 %v270
    %v437 = vunpack.c.l.b16 %v271
    %v438 = vunpack.c.h.b16 %v271
    %v439 = vunpack.c.l.b16 %v272
    %v440 = vunpack.c.h.b16 %v272
    %v441 = vunpack.c.l.b16 %v273
    %v442 = vunpack.c.h.b16 %v273
    %v443 = vunpack.c.l.b16 %v274
    %v444 = vunpack.c.h.b16 %v274
    %v445 = vunpack.c.l.b16 %v275
    %v446 = vunpack.c.h.b16 %v275
    %v447 = vunpack.c.l.b16 %v276
    %v448 = vunpack.c.h.b16 %v276
    %v449 = vunpack.c.l.b16 %v277
    %v450 = vunpack.c.h.b16 %v277
    %v451 = vunpack.c.l.b16 %v278
    %v452 = vunpack.c.h.b16 %v278
    %v453 = vpack.c.b16 %v391, %v389
    %v454 = vpack.c.b16 %v392, %v390
    %v455 = vpack.c.b16 %v395, %v393
    %v456 = vpack.c.b16 %v396, %v394
    %v457 = vpack.c.b16 %v399, %v397
    %v458 = vpack.c.b16 %v400, %v398
    %v459 = vpack.c.b16 %v403, %v401
    %v460 = vpack.c.b16 %v404, %v402
    %v461 = vpack.c.b16 %v407, %v405
    %v462 = vpack.c.b16 %v408, %v406
    %v463 = vpack.c.b16 %v411, %v409
    %v464 = vpack.c.b16 %v412, %v410
    %v465 = vpack.c.b16 %v415, %v413
    %v466 = vpack.c.b16 %v416, %v414
    %v467 = vpack.c.b16 %v419, %v417
    %v468 = vpack.c.b16 %v420, %v418
    %v469 = vpack.c.b16 %v423, %v421
    %v470 = vpack.c.b16 %v424, %v422
    %v471 = vpack.c.b16 %v427, %v425
    %v472 = vpack.c.b16 %v428, %v426
    %v473 = vpack.c.b16 %v431, %v429
    %v474 = vpack.c.b16 %v432, %v430
    %v475 = vpack.c.b16 %v435, %v433
    %v476 = vpack.c.b16 %v436, %v434
    %v477 = vpack.c.b16 %v439, %v437
    %v478 = vpack.c.b16 %v440, %v438
    %v479 = vpack.c.b16 %v443, %v441
    %v480 = vpack.c.b16 %v444, %v442
    %v481 = vpack.c.b16 %v447, %v445
    %v482 = vpack.c.b16 %v448, %v446
    %v483 = vpack.c.b16 %v451, %v449
    %v484 = vpack.c.b16 %v452, %v450
    %517 = vmatpush.bf16.msra.mxu0 %v467
    %518 = vmatpush.bf16.msra.mxu0 %v465
    %519 = vmatpush.bf16.msra.mxu0 %v463
    %520 = vmatpush.bf16.msra.mxu0 %v461
    %521 = vmatpush.bf16.msra.mxu0 %v459
    %522 = vmatpush.bf16.msra.mxu0 %v457
    %523 = vmatpush.bf16.msra.mxu0 %v455
    %524 = vmatpush.bf16.msra.mxu0 %v453
    %525 = vmatmul.bf16.gmra.mxu0 %v350
    %v526 = vpop.f32.mrf.mxu0
    %v527 = vadd.f32 %v353, %v526
    %v528 = vpop.f32.mrf.mxu0
    %v529 = vadd.f32 %v353, %v528
    %530 = vdwg.mxu0
    %531 = vmatpush.bf16.msra.mxu0 %v483
    %532 = vmatpush.bf16.msra.mxu0 %v481
    %533 = vmatpush.bf16.msra.mxu0 %v479
    %534 = vmatpush.bf16.msra.mxu0 %v477
    %535 = vmatpush.bf16.msra.mxu0 %v475
    %536 = vmatpush.bf16.msra.mxu0 %v473
    %537 = vmatpush.bf16.msra.mxu0 %v471
    %538 = vmatpush.bf16.msra.mxu0 %v469
    %539 = vmatmul.bf16.gmra.mxu0 %v319
    %v540 = vpop.f32.mrf.mxu0
    %v541 = vadd.f32 %v527, %v540
    %v542 = vpop.f32.mrf.mxu0
    %v543 = vadd.f32 %v529, %v542
    %544 = vdwg.mxu0
    %545 = vmatpush.bf16.msra.mxu0 %v468
    %546 = vmatpush.bf16.msra.mxu0 %v466
    %547 = vmatpush.bf16.msra.mxu0 %v464
    %548 = vmatpush.bf16.msra.mxu0 %v462
    %549 = vmatpush.bf16.msra.mxu0 %v460
    %550 = vmatpush.bf16.msra.mxu0 %v458
    %551 = vmatpush.bf16.msra.mxu0 %v456
    %552 = vmatpush.bf16.msra.mxu0 %v454
    %553 = vmatmul.bf16.gmra.mxu0 %v350
    %v554 = vpop.f32.mrf.mxu0
    %v555 = vadd.f32 %v354, %v554
    %v556 = vpop.f32.mrf.mxu0
    %v557 = vadd.f32 %v354, %v556
    %558 = vdwg.mxu0
    %559 = vmatpush.bf16.msra.mxu0 %v484
    %560 = vmatpush.bf16.msra.mxu0 %v482
    %561 = vmatpush.bf16.msra.mxu0 %v480
    %562 = vmatpush.bf16.msra.mxu0 %v478
    %563 = vmatpush.bf16.msra.mxu0 %v476
    %564 = vmatpush.bf16.msra.mxu0 %v474
    %565 = vmatpush.bf16.msra.mxu0 %v472
    %566 = vmatpush.bf16.msra.mxu0 %v470
    %567 = vmatmul.bf16.gmra.mxu0 %v319
    %v568 = vpop.f32.mrf.mxu0
    %v569 = vadd.f32 %v555, %v568
    %v570 = vpop.f32.mrf.mxu0
    %v571 = vadd.f32 %v557, %v570
    %572 = vdwg.mxu0
    %v573 = vmax.f32 %v541, 0.0
    %v574 = vmax.f32 %v543, 0.0
    %v575 = vpack.c.bf16 %v573, %v573
    %v576 = vpack.c.bf16 %v574, %v574
    %v579 = vunpack.c.l.b16 %v575
    %v580 = vunpack.c.l.b16 %v576
    %v581 = vpack.c.b16 %v580, %v579
    %v583 = vshrl.u32 %v581, 16
    %v585 = vrot.slane %v583, 7
    %v586 = vshll.u32 %v581, 16
    %v588 = vor.u32 %v585, %v586
    %v590 = vsel %vm330, 0, %v588
    %v591 = vsel %vm349, %v590, 0
    %v609 = vunpack.c.l.b16 %v296
    %v610 = vunpack.c.l.b16 %v297
    %v611 = vunpack.c.l.b16 %v298
    %v612 = vunpack.c.l.b16 %v299
    %v613 = vunpack.c.l.b16 %v300
    %v614 = vunpack.c.l.b16 %v301
    %v615 = vunpack.c.l.b16 %v302
    %v616 = vunpack.c.l.b16 %v303
    %v617 = vunpack.c.l.b16 %v304
    %v618 = vunpack.c.l.b16 %v305
    %v619 = vunpack.c.l.b16 %v306
    %v620 = vunpack.c.l.b16 %v307
    %v621 = vunpack.c.l.b16 %v308
    %v622 = vunpack.c.l.b16 %v309
    %v623 = vunpack.c.l.b16 %v310
    %v624 = vunpack.c.l.b16 %v311
    %v625 = vpack.c.b16 %v610, %v609
    %v626 = vpack.c.b16 %v612, %v611
    %v627 = vpack.c.b16 %v614, %v613
    %v628 = vpack.c.b16 %v616, %v615
    %v629 = vpack.c.b16 %v618, %v617
    %v630 = vpack.c.b16 %v620, %v619
    %v631 = vpack.c.b16 %v622, %v621
    %v632 = vpack.c.b16 %v624, %v623
    %641 = vmatpush.bf16.msra.mxu0 %v632
    %642 = vmatpush.bf16.msra.mxu0 %v631
    %643 = vmatpush.bf16.msra.mxu0 %v630
    %644 = vmatpush.bf16.msra.mxu0 %v629
    %645 = vmatpush.bf16.msra.mxu0 %v628
    %646 = vmatpush.bf16.msra.mxu0 %v627
    %647 = vmatpush.bf16.msra.mxu0 %v626
    %648 = vmatpush.bf16.msra.mxu0 %v625
    %649 = vmatmul.bf16.gmra.mxu0 %v581
    %v650 = vpop.f32.mrf.mxu0
    %v651 = vadd.f32 0.0, %v650
    %v652 = vpop.f32.mrf.mxu0
    %v653 = vadd.f32 0.0, %v652
    %654 = vdwg.mxu0
    %v671 = vunpack.c.l.b16 %v280
    %v672 = vunpack.c.l.b16 %v281
    %v673 = vunpack.c.l.b16 %v282
    %v674 = vunpack.c.l.b16 %v283
    %v675 = vunpack.c.l.b16 %v284
    %v676 = vunpack.c.l.b16 %v285
    %v677 = vunpack.c.l.b16 %v286
    %v678 = vunpack.c.l.b16 %v287
    %v679 = vunpack.c.l.b16 %v288
    %v680 = vunpack.c.l.b16 %v289
    %v681 = vunpack.c.l.b16 %v290
    %v682 = vunpack.c.l.b16 %v291
    %v683 = vunpack.c.l.b16 %v292
    %v684 = vunpack.c.l.b16 %v293
    %v685 = vunpack.c.l.b16 %v294
    %v686 = vunpack.c.l.b16 %v295
    %v687 = vpack.c.b16 %v672, %v671
    %v688 = vpack.c.b16 %v674, %v673
    %v689 = vpack.c.b16 %v676, %v675
    %v690 = vpack.c.b16 %v678, %v677
    %v691 = vpack.c.b16 %v680, %v679
    %v692 = vpack.c.b16 %v682, %v681
    %v693 = vpack.c.b16 %v684, %v683
    %v694 = vpack.c.b16 %v686, %v685
    %703 = vmatpush.bf16.msra.mxu0 %v694
    %704 = vmatpush.bf16.msra.mxu0 %v693
    %705 = vmatpush.bf16.msra.mxu0 %v692
    %706 = vmatpush.bf16.msra.mxu0 %v691
    %707 = vmatpush.bf16.msra.mxu0 %v690
    %708 = vmatpush.bf16.msra.mxu0 %v689
    %709 = vmatpush.bf16.msra.mxu0 %v688
    %710 = vmatpush.bf16.msra.mxu0 %v687
    %711 = vmatmul.bf16.gmra.mxu0 %v591
    %v712 = vpop.f32.mrf.mxu0
    %v713 = vadd.f32 %v651, %v712
    %v714 = vpop.f32.mrf.mxu0
    %v715 = vadd.f32 %v653, %v714
    %716 = vdwg.mxu0
    %v718 = vperm.slane %v312, 0
    %v720 = vadd.f32 %v713, %v718
    %v721 = vadd.f32 %v715, %v718
    %v722 = vmax.f32 %v720, 0.0
    %v723 = vmax.f32 %v721, 0.0
    %v724 = vadd.f32 %v722, %v569
    %v725 = vadd.f32 %v723, %v571
    %v726 = vmax.f32 %v724, 0.0
    %v727 = vmax.f32 %v725, 0.0
    %v728 = vpack.c.bf16 %v726, %v726
    %v729 = vpack.c.bf16 %v727, %v727
    %v730 = vld [vmem:[#allocation9] sm:$0xf]
    %v731 = vld [vmem:[#allocation9 + $0x4] sm:$0xf]
    %v732 = vld [vmem:[#allocation9 + $0x8] sm:$0xf]
    %v733 = vld [vmem:[#allocation9 + $0xc] sm:$0xf]
    %v734 = vld [vmem:[#allocation9 + $0x10] sm:$0xf]
    %v735 = vld [vmem:[#allocation9 + $0x14] sm:$0xf]
    %v736 = vld [vmem:[#allocation9 + $0x18] sm:$0xf]
    %v737 = vld [vmem:[#allocation9 + $0x1c] sm:$0xf]
    %v738 = vld [vmem:[#allocation9 + $0x20] sm:$0xf]
    %v739 = vld [vmem:[#allocation9 + $0x24] sm:$0xf]
    %v740 = vld [vmem:[#allocation9 + $0x28] sm:$0xf]
    %v741 = vld [vmem:[#allocation9 + $0x2c] sm:$0xf]
    %v742 = vld [vmem:[#allocation9 + $0x30] sm:$0xf]
    %v743 = vld [vmem:[#allocation9 + $0x34] sm:$0xf]
    %v744 = vld [vmem:[#allocation9 + $0x38] sm:$0xf]
    %v745 = vld [vmem:[#allocation9 + $0x3c] sm:$0xf]
    %v746 = vld [vmem:[#allocation9 + $0x40] sm:$0xf]
    %v747 = vld [vmem:[#allocation9 + $0x44] sm:$0xf]
    %v748 = vld [vmem:[#allocation9 + $0x48] sm:$0xf]
    %v749 = vld [vmem:[#allocation9 + $0x4c] sm:$0xf]
    %v750 = vld [vmem:[#allocation9 + $0x50] sm:$0xf]
    %v751 = vld [vmem:[#allocation9 + $0x54] sm:$0xf]
    %v752 = vld [vmem:[#allocation9 + $0x58] sm:$0xf]
    %v753 = vld [vmem:[#allocation9 + $0x5c] sm:$0xf]
    %v754 = vld [vmem:[#allocation9 + $0x60] sm:$0xf]
    %v755 = vld [vmem:[#allocation9 + $0x64] sm:$0xf]
    %v756 = vld [vmem:[#allocation9 + $0x68] sm:$0xf]
    %v757 = vld [vmem:[#allocation9 + $0x6c] sm:$0xf]
    %v758 = vld [vmem:[#allocation9 + $0x70] sm:$0xf]
    %v759 = vld [vmem:[#allocation9 + $0x74] sm:$0xf]
    %v760 = vld [vmem:[#allocation9 + $0x78] sm:$0xf]
    %v761 = vld [vmem:[#allocation9 + $0x7c] sm:$0xf]
    %v762 = vld [vmem:[%s7] sm:$0x1]
    %v763 = vld [vmem:[#allocation11] sm:$0xf]
    %v764 = vld [vmem:[#allocation11 + $0x4] sm:$0xf]
    %v765 = vld [vmem:[#allocation11 + $0x8] sm:$0xf]
    %v766 = vld [vmem:[#allocation11 + $0xc] sm:$0xf]
    %v767 = vld [vmem:[#allocation11 + $0x10] sm:$0xf]
    %v768 = vld [vmem:[#allocation11 + $0x14] sm:$0xf]
    %v769 = vld [vmem:[#allocation11 + $0x18] sm:$0xf]
    %v770 = vld [vmem:[#allocation11 + $0x1c] sm:$0xf]
    %v771 = vld [vmem:[#allocation11 + $0x20] sm:$0xf]
    %v772 = vld [vmem:[#allocation11 + $0x24] sm:$0xf]
    %v773 = vld [vmem:[#allocation11 + $0x28] sm:$0xf]
    %v774 = vld [vmem:[#allocation11 + $0x2c] sm:$0xf]
    %v775 = vld [vmem:[#allocation11 + $0x30] sm:$0xf]
    %v776 = vld [vmem:[#allocation11 + $0x34] sm:$0xf]
    %v777 = vld [vmem:[#allocation11 + $0x38] sm:$0xf]
    %v778 = vld [vmem:[#allocation11 + $0x3c] sm:$0xf]
    %v779 = vld [vmem:[#allocation12] sm:$0xf]
    %v780 = vld [vmem:[#allocation12 + $0x4] sm:$0xf]
    %v781 = vld [vmem:[#allocation12 + $0x8] sm:$0xf]
    %v782 = vld [vmem:[#allocation12 + $0xc] sm:$0xf]
    %v783 = vld [vmem:[#allocation12 + $0x10] sm:$0xf]
    %v784 = vld [vmem:[#allocation12 + $0x14] sm:$0xf]
    %v785 = vld [vmem:[#allocation12 + $0x18] sm:$0xf]
    %v786 = vld [vmem:[#allocation12 + $0x1c] sm:$0xf]
    %v787 = vld [vmem:[#allocation12 + $0x20] sm:$0xf]
    %v788 = vld [vmem:[#allocation12 + $0x24] sm:$0xf]
    %v789 = vld [vmem:[#allocation12 + $0x28] sm:$0xf]
    %v790 = vld [vmem:[#allocation12 + $0x2c] sm:$0xf]
    %v791 = vld [vmem:[#allocation12 + $0x30] sm:$0xf]
    %v792 = vld [vmem:[#allocation12 + $0x34] sm:$0xf]
    %v793 = vld [vmem:[#allocation12 + $0x38] sm:$0xf]
    %v794 = vld [vmem:[#allocation12 + $0x3c] sm:$0xf]
    %v795 = vld [vmem:[%s10] sm:$0x1]
    %vm796 = vcmp.ge.s32.totalorder %v243, 2
    %vm797 = vcmp.ge.s32.totalorder %v244, 2
    %v800 = vunpack.c.l.b16 %v728
    %v801 = vunpack.c.l.b16 %v729
    %v802 = vpack.c.b16 %v801, %v800
    %v803 = vrot.slane %v802, 7
    %vm804 = vcmask 1040384
    %v807 = vsel %vm804, 0, %v803
    %v809 = vsel %vm796, 1, 0
    %v810 = vsel %vm797, 1, 0
    %vm811 = vcmp.eq.s32.totalorder %v809, 1
    %vm812 = vcmp.eq.s32.totalorder %v810, 1
    %vm813 = vmpackc.low %vm811, %vm811
    %vm814 = vmpackc.low %vm812, %vm812
    %v815 = vsel %vm813, 65537, 0
    %v816 = vsel %vm814, 65537, 0
    %v817 = vunpack.c.l.b16 %v815
    %v818 = vunpack.c.l.b16 %v816
    %v819 = vpack.c.b16 %v818, %v817
    %v820 = vunpack.c.l.b16 %v819
    %v821 = vunpack.c.h.b16 %v819
    %v822 = vunpack.c.l.b16 0
    %v823 = vunpack.c.h.b16 0
    %vm824 = vcmp.ne.s32.totalorder %v820, %v822
    %vm825 = vcmp.ne.s32.totalorder %v821, %v823
    %vm826 = vmpackc.low %vm825, %vm824
    %v827 = vsel %vm826, %v807, 0
    %v830 = vperm.slane %v762, 0
    %v864 = vunpack.c.l.b16 %v730
    %v865 = vunpack.c.l.b16 %v731
    %v866 = vunpack.c.l.b16 %v732
    %v867 = vunpack.c.l.b16 %v733
    %v868 = vunpack.c.l.b16 %v734
    %v869 = vunpack.c.l.b16 %v735
    %v870 = vunpack.c.l.b16 %v736
    %v871 = vunpack.c.l.b16 %v737
    %v872 = vunpack.c.l.b16 %v738
    %v873 = vunpack.c.l.b16 %v739
    %v874 = vunpack.c.l.b16 %v740
    %v875 = vunpack.c.l.b16 %v741
    %v876 = vunpack.c.l.b16 %v742
    %v877 = vunpack.c.l.b16 %v743
    %v878 = vunpack.c.l.b16 %v744
    %v879 = vunpack.c.l.b16 %v745
    %v880 = vunpack.c.l.b16 %v746
    %v881 = vunpack.c.l.b16 %v747
    %v882 = vunpack.c.l.b16 %v748
    %v883 = vunpack.c.l.b16 %v749
    %v884 = vunpack.c.l.b16 %v750
    %v885 = vunpack.c.l.b16 %v751
    %v886 = vunpack.c.l.b16 %v752
    %v887 = vunpack.c.l.b16 %v753
    %v888 = vunpack.c.l.b16 %v754
    %v889 = vunpack.c.l.b16 %v755
    %v890 = vunpack.c.l.b16 %v756
    %v891 = vunpack.c.l.b16 %v757
    %v892 = vunpack.c.l.b16 %v758
    %v893 = vunpack.c.l.b16 %v759
    %v894 = vunpack.c.l.b16 %v760
    %v895 = vunpack.c.l.b16 %v761
    %v896 = vpack.c.b16 %v865, %v864
    %v897 = vpack.c.b16 %v867, %v866
    %v898 = vpack.c.b16 %v869, %v868
    %v899 = vpack.c.b16 %v871, %v870
    %v900 = vpack.c.b16 %v873, %v872
    %v901 = vpack.c.b16 %v875, %v874
    %v902 = vpack.c.b16 %v877, %v876
    %v903 = vpack.c.b16 %v879, %v878
    %v904 = vpack.c.b16 %v881, %v880
    %v905 = vpack.c.b16 %v883, %v882
    %v906 = vpack.c.b16 %v885, %v884
    %v907 = vpack.c.b16 %v887, %v886
    %v908 = vpack.c.b16 %v889, %v888
    %v909 = vpack.c.b16 %v891, %v890
    %v910 = vpack.c.b16 %v893, %v892
    %v911 = vpack.c.b16 %v895, %v894
    %928 = vmatpush.bf16.msra.mxu0 %v903
    %929 = vmatpush.bf16.msra.mxu0 %v902
    %930 = vmatpush.bf16.msra.mxu0 %v901
    %931 = vmatpush.bf16.msra.mxu0 %v900
    %932 = vmatpush.bf16.msra.mxu0 %v899
    %933 = vmatpush.bf16.msra.mxu0 %v898
    %934 = vmatpush.bf16.msra.mxu0 %v897
    %935 = vmatpush.bf16.msra.mxu0 %v896
    %936 = vmatmul.bf16.gmra.mxu0 %v827
    %v937 = vpop.f32.mrf.mxu0
    %v938 = vadd.f32 %v830, %v937
    %v939 = vpop.f32.mrf.mxu0
    %v940 = vadd.f32 %v830, %v939
    %941 = vdwg.mxu0
    %942 = vmatpush.bf16.msra.mxu0 %v911
    %943 = vmatpush.bf16.msra.mxu0 %v910
    %944 = vmatpush.bf16.msra.mxu0 %v909
    %945 = vmatpush.bf16.msra.mxu0 %v908
    %946 = vmatpush.bf16.msra.mxu0 %v907
    %947 = vmatpush.bf16.msra.mxu0 %v906
    %948 = vmatpush.bf16.msra.mxu0 %v905
    %949 = vmatpush.bf16.msra.mxu0 %v904
    %950 = vmatmul.bf16.gmra.mxu0 %v802
    %v951 = vpop.f32.mrf.mxu0
    %v952 = vadd.f32 %v938, %v951
    %v953 = vpop.f32.mrf.mxu0
    %v954 = vadd.f32 %v940, %v953
    %955 = vdwg.mxu0
    %v956 = vmax.f32 %v952, 0.0
    %v957 = vmax.f32 %v954, 0.0
    %v958 = vunpack.c.l.bf16 %v728
    %v959 = vunpack.c.l.bf16 %v729
    %v960 = vpack.c.bf16 %v956, %v956
    %v961 = vpack.c.bf16 %v957, %v957
    %v964 = vunpack.c.l.b16 %v960
    %v965 = vunpack.c.l.b16 %v961
    %v966 = vpack.c.b16 %v965, %v964
    %v967 = vrot.slane %v966, 7
    %v969 = vsel %vm804, 0, %v967
    %v971 = vsel %vm826, %v969, 0
    %v989 = vunpack.c.l.b16 %v779
    %v990 = vunpack.c.l.b16 %v780
    %v991 = vunpack.c.l.b16 %v781
    %v992 = vunpack.c.l.b16 %v782
    %v993 = vunpack.c.l.b16 %v783
    %v994 = vunpack.c.l.b16 %v784
    %v995 = vunpack.c.l.b16 %v785
    %v996 = vunpack.c.l.b16 %v786
    %v997 = vunpack.c.l.b16 %v787
    %v998 = vunpack.c.l.b16 %v788
    %v999 = vunpack.c.l.b16 %v789
    %v1000 = vunpack.c.l.b16 %v790
    %v1001 = vunpack.c.l.b16 %v791
    %v1002 = vunpack.c.l.b16 %v792
    %v1003 = vunpack.c.l.b16 %v793
    %v1004 = vunpack.c.l.b16 %v794
    %v1005 = vpack.c.b16 %v990, %v989
    %v1006 = vpack.c.b16 %v992, %v991
    %v1007 = vpack.c.b16 %v994, %v993
    %v1008 = vpack.c.b16 %v996, %v995
    %v1009 = vpack.c.b16 %v998, %v997
    %v1010 = vpack.c.b16 %v1000, %v999
    %v1011 = vpack.c.b16 %v1002, %v1001
    %v1012 = vpack.c.b16 %v1004, %v1003
    %1021 = vmatpush.bf16.msra.mxu0 %v1012
    %1022 = vmatpush.bf16.msra.mxu0 %v1011
    %1023 = vmatpush.bf16.msra.mxu0 %v1010
    %1024 = vmatpush.bf16.msra.mxu0 %v1009
    %1025 = vmatpush.bf16.msra.mxu0 %v1008
    %1026 = vmatpush.bf16.msra.mxu0 %v1007
    %1027 = vmatpush.bf16.msra.mxu0 %v1006
    %1028 = vmatpush.bf16.msra.mxu0 %v1005
    %1029 = vmatmul.bf16.gmra.mxu0 %v966
    %v1030 = vpop.f32.mrf.mxu0
    %v1031 = vadd.f32 0.0, %v1030
    %v1032 = vpop.f32.mrf.mxu0
    %v1033 = vadd.f32 0.0, %v1032
    %1034 = vdwg.mxu0
    %v1051 = vunpack.c.l.b16 %v763
    %v1052 = vunpack.c.l.b16 %v764
    %v1053 = vunpack.c.l.b16 %v765
    %v1054 = vunpack.c.l.b16 %v766
    %v1055 = vunpack.c.l.b16 %v767
    %v1056 = vunpack.c.l.b16 %v768
    %v1057 = vunpack.c.l.b16 %v769
    %v1058 = vunpack.c.l.b16 %v770
    %v1059 = vunpack.c.l.b16 %v771
    %v1060 = vunpack.c.l.b16 %v772
    %v1061 = vunpack.c.l.b16 %v773
    %v1062 = vunpack.c.l.b16 %v774
    %v1063 = vunpack.c.l.b16 %v775
    %v1064 = vunpack.c.l.b16 %v776
    %v1065 = vunpack.c.l.b16 %v777
    %v1066 = vunpack.c.l.b16 %v778
    %v1067 = vpack.c.b16 %v1052, %v1051
    %v1068 = vpack.c.b16 %v1054, %v1053
    %v1069 = vpack.c.b16 %v1056, %v1055
    %v1070 = vpack.c.b16 %v1058, %v1057
    %v1071 = vpack.c.b16 %v1060, %v1059
    %v1072 = vpack.c.b16 %v1062, %v1061
    %v1073 = vpack.c.b16 %v1064, %v1063
    %v1074 = vpack.c.b16 %v1066, %v1065
    %1083 = vmatpush.bf16.msra.mxu0 %v1074
    %1084 = vmatpush.bf16.msra.mxu0 %v1073
    %1085 = vmatpush.bf16.msra.mxu0 %v1072
    %1086 = vmatpush.bf16.msra.mxu0 %v1071
    %1087 = vmatpush.bf16.msra.mxu0 %v1070
    %1088 = vmatpush.bf16.msra.mxu0 %v1069
    %1089 = vmatpush.bf16.msra.mxu0 %v1068
    %1090 = vmatpush.bf16.msra.mxu0 %v1067
    %1091 = vmatmul.bf16.gmra.mxu0 %v971
    %v1092 = vpop.f32.mrf.mxu0
    %v1093 = vadd.f32 %v1031, %v1092
    %v1094 = vpop.f32.mrf.mxu0
    %v1095 = vadd.f32 %v1033, %v1094
    %1096 = vdwg.mxu0
    %v1098 = vperm.slane %v795, 0
    %v1100 = vadd.f32 %v1093, %v1098
    %v1101 = vadd.f32 %v1095, %v1098
    %v1102 = vmax.f32 %v1100, 0.0
    %v1103 = vmax.f32 %v1101, 0.0
    %v1104 = vadd.f32 %v1102, %v958
    %v1105 = vadd.f32 %v1103, %v959
    %v1106 = vmax.f32 %v1104, 0.0
    %v1107 = vmax.f32 %v1105, 0.0
    %v1108 = vpack.c.bf16 %v1106, %v1106
    %v1109 = vpack.c.bf16 %v1107, %v1107
    %v1110 = vld [vmem:[#allocation14] sm:$0xf]
    %v1111 = vld [vmem:[#allocation14 + $0x4] sm:$0xf]
    %v1112 = vld [vmem:[#allocation14 + $0x8] sm:$0xf]
    %v1113 = vld [vmem:[#allocation14 + $0xc] sm:$0xf]
    %v1114 = vld [vmem:[#allocation14 + $0x10] sm:$0xf]
    %v1115 = vld [vmem:[#allocation14 + $0x14] sm:$0xf]
    %v1116 = vld [vmem:[#allocation14 + $0x18] sm:$0xf]
    %v1117 = vld [vmem:[#allocation14 + $0x1c] sm:$0xf]
    %v1118 = vld [vmem:[#allocation14 + $0x20] sm:$0xf]
    %v1119 = vld [vmem:[#allocation14 + $0x24] sm:$0xf]
    %v1120 = vld [vmem:[#allocation14 + $0x28] sm:$0xf]
    %v1121 = vld [vmem:[#allocation14 + $0x2c] sm:$0xf]
    %v1122 = vld [vmem:[#allocation14 + $0x30] sm:$0xf]
    %v1123 = vld [vmem:[#allocation14 + $0x34] sm:$0xf]
    %v1124 = vld [vmem:[#allocation14 + $0x38] sm:$0xf]
    %v1125 = vld [vmem:[#allocation14 + $0x3c] sm:$0xf]
    %v1126 = vld [vmem:[#allocation14 + $0x40] sm:$0xf]
    %v1127 = vld [vmem:[#allocation14 + $0x44] sm:$0xf]
    %v1128 = vld [vmem:[#allocation14 + $0x48] sm:$0xf]
    %v1129 = vld [vmem:[#allocation14 + $0x4c] sm:$0xf]
    %v1130 = vld [vmem:[#allocation14 + $0x50] sm:$0xf]
    %v1131 = vld [vmem:[#allocation14 + $0x54] sm:$0xf]
    %v1132 = vld [vmem:[#allocation14 + $0x58] sm:$0xf]
    %v1133 = vld [vmem:[#allocation14 + $0x5c] sm:$0xf]
    %v1134 = vld [vmem:[#allocation14 + $0x60] sm:$0xf]
    %v1135 = vld [vmem:[#allocation14 + $0x64] sm:$0xf]
    %v1136 = vld [vmem:[#allocation14 + $0x68] sm:$0xf]
    %v1137 = vld [vmem:[#allocation14 + $0x6c] sm:$0xf]
    %v1138 = vld [vmem:[#allocation14 + $0x70] sm:$0xf]
    %v1139 = vld [vmem:[#allocation14 + $0x74] sm:$0xf]
    %v1140 = vld [vmem:[#allocation14 + $0x78] sm:$0xf]
    %v1141 = vld [vmem:[#allocation14 + $0x7c] sm:$0xf]
    %v1142 = vld [vmem:[%s12] sm:$0x1]
    %v1143 = vld [vmem:[#allocation15] sm:$0xf]
    %v1144 = vld [vmem:[#allocation15 + $0x4] sm:$0xf]
    %v1145 = vld [vmem:[#allocation15 + $0x8] sm:$0xf]
    %v1146 = vld [vmem:[#allocation15 + $0xc] sm:$0xf]
    %v1147 = vld [vmem:[#allocation15 + $0x10] sm:$0xf]
    %v1148 = vld [vmem:[#allocation15 + $0x14] sm:$0xf]
    %v1149 = vld [vmem:[#allocation15 + $0x18] sm:$0xf]
    %v1150 = vld [vmem:[#allocation15 + $0x1c] sm:$0xf]
    %v1151 = vld [vmem:[#allocation15 + $0x20] sm:$0xf]
    %v1152 = vld [vmem:[#allocation15 + $0x24] sm:$0xf]
    %v1153 = vld [vmem:[#allocation15 + $0x28] sm:$0xf]
    %v1154 = vld [vmem:[#allocation15 + $0x2c] sm:$0xf]
    %v1155 = vld [vmem:[#allocation15 + $0x30] sm:$0xf]
    %v1156 = vld [vmem:[#allocation15 + $0x34] sm:$0xf]
    %v1157 = vld [vmem:[#allocation15 + $0x38] sm:$0xf]
    %v1158 = vld [vmem:[#allocation15 + $0x3c] sm:$0xf]
    %v1159 = vld [vmem:[#allocation17] sm:$0xf]
    %v1160 = vld [vmem:[#allocation17 + $0x4] sm:$0xf]
    %v1161 = vld [vmem:[#allocation17 + $0x8] sm:$0xf]
    %v1162 = vld [vmem:[#allocation17 + $0xc] sm:$0xf]
    %v1163 = vld [vmem:[#allocation17 + $0x10] sm:$0xf]
    %v1164 = vld [vmem:[#allocation17 + $0x14] sm:$0xf]
    %v1165 = vld [vmem:[#allocation17 + $0x18] sm:$0xf]
    %v1166 = vld [vmem:[#allocation17 + $0x1c] sm:$0xf]
    %v1167 = vld [vmem:[#allocation17 + $0x20] sm:$0xf]
    %v1168 = vld [vmem:[#allocation17 + $0x24] sm:$0xf]
    %v1169 = vld [vmem:[#allocation17 + $0x28] sm:$0xf]
    %v1170 = vld [vmem:[#allocation17 + $0x2c] sm:$0xf]
    %v1171 = vld [vmem:[#allocation17 + $0x30] sm:$0xf]
    %v1172 = vld [vmem:[#allocation17 + $0x34] sm:$0xf]
    %v1173 = vld [vmem:[#allocation17 + $0x38] sm:$0xf]
    %v1174 = vld [vmem:[#allocation17 + $0x3c] sm:$0xf]
    %v1175 = vld [vmem:[%s15] sm:$0x1]
    %vm1176 = vcmp.ge.s32.totalorder %v243, 4
    %vm1177 = vcmp.ge.s32.totalorder %v244, 4
    %v1180 = vunpack.c.l.b16 %v1108
    %v1181 = vunpack.c.l.b16 %v1109
    %v1182 = vpack.c.b16 %v1181, %v1180
    %v1183 = vrot.slane %v1182, 6
    %vm1184 = vcmask 1041408
    %v1186 = vsel %vm1184, 0, %v1183
    %v1188 = vsel %vm1176, 1, 0
    %v1189 = vsel %vm1177, 1, 0
    %vm1190 = vcmp.eq.s32.totalorder %v1188, 1
    %vm1191 = vcmp.eq.s32.totalorder %v1189, 1
    %vm1192 = vmpackc.low %vm1190, %vm1190
    %vm1193 = vmpackc.low %vm1191, %vm1191
    %v1194 = vsel %vm1192, 65537, 0
    %v1195 = vsel %vm1193, 65537, 0
    %v1196 = vunpack.c.l.b16 %v1194
    %v1197 = vunpack.c.l.b16 %v1195
    %v1198 = vpack.c.b16 %v1197, %v1196
    %v1199 = vunpack.c.l.b16 %v1198
    %v1200 = vunpack.c.h.b16 %v1198
    %v1201 = vunpack.c.l.b16 0
    %v1202 = vunpack.c.h.b16 0
    %vm1203 = vcmp.ne.s32.totalorder %v1199, %v1201
    %vm1204 = vcmp.ne.s32.totalorder %v1200, %v1202
    %vm1205 = vmpackc.low %vm1204, %vm1203
    %v1206 = vsel %vm1205, %v1186, 0
    %v1209 = vperm.slane %v1142, 0
    %v1243 = vunpack.c.l.b16 %v1110
    %v1244 = vunpack.c.l.b16 %v1111
    %v1245 = vunpack.c.l.b16 %v1112
    %v1246 = vunpack.c.l.b16 %v1113
    %v1247 = vunpack.c.l.b16 %v1114
    %v1248 = vunpack.c.l.b16 %v1115
    %v1249 = vunpack.c.l.b16 %v1116
    %v1250 = vunpack.c.l.b16 %v1117
    %v1251 = vunpack.c.l.b16 %v1118
    %v1252 = vunpack.c.l.b16 %v1119
    %v1253 = vunpack.c.l.b16 %v1120
    %v1254 = vunpack.c.l.b16 %v1121
    %v1255 = vunpack.c.l.b16 %v1122
    %v1256 = vunpack.c.l.b16 %v1123
    %v1257 = vunpack.c.l.b16 %v1124
    %v1258 = vunpack.c.l.b16 %v1125
    %v1259 = vunpack.c.l.b16 %v1126
    %v1260 = vunpack.c.l.b16 %v1127
    %v1261 = vunpack.c.l.b16 %v1128
    %v1262 = vunpack.c.l.b16 %v1129
    %v1263 = vunpack.c.l.b16 %v1130
    %v1264 = vunpack.c.l.b16 %v1131
    %v1265 = vunpack.c.l.b16 %v1132
    %v1266 = vunpack.c.l.b16 %v1133
    %v1267 = vunpack.c.l.b16 %v1134
    %v1268 = vunpack.c.l.b16 %v1135
    %v1269 = vunpack.c.l.b16 %v1136
    %v1270 = vunpack.c.l.b16 %v1137
    %v1271 = vunpack.c.l.b16 %v1138
    %v1272 = vunpack.c.l.b16 %v1139
    %v1273 = vunpack.c.l.b16 %v1140
    %v1274 = vunpack.c.l.b16 %v1141
    %v1275 = vpack.c.b16 %v1244, %v1243
    %v1276 = vpack.c.b16 %v1246, %v1245
    %v1277 = vpack.c.b16 %v1248, %v1247
    %v1278 = vpack.c.b16 %v1250, %v1249
    %v1279 = vpack.c.b16 %v1252, %v1251
    %v1280 = vpack.c.b16 %v1254, %v1253
    %v1281 = vpack.c.b16 %v1256, %v1255
    %v1282 = vpack.c.b16 %v1258, %v1257
    %v1283 = vpack.c.b16 %v1260, %v1259
    %v1284 = vpack.c.b16 %v1262, %v1261
    %v1285 = vpack.c.b16 %v1264, %v1263
    %v1286 = vpack.c.b16 %v1266, %v1265
    %v1287 = vpack.c.b16 %v1268, %v1267
    %v1288 = vpack.c.b16 %v1270, %v1269
    %v1289 = vpack.c.b16 %v1272, %v1271
    %v1290 = vpack.c.b16 %v1274, %v1273
    %1307 = vmatpush.bf16.msra.mxu0 %v1282
    %1308 = vmatpush.bf16.msra.mxu0 %v1281
    %1309 = vmatpush.bf16.msra.mxu0 %v1280
    %1310 = vmatpush.bf16.msra.mxu0 %v1279
    %1311 = vmatpush.bf16.msra.mxu0 %v1278
    %1312 = vmatpush.bf16.msra.mxu0 %v1277
    %1313 = vmatpush.bf16.msra.mxu0 %v1276
    %1314 = vmatpush.bf16.msra.mxu0 %v1275
    %1315 = vmatmul.bf16.gmra.mxu0 %v1206
    %v1316 = vpop.f32.mrf.mxu0
    %v1317 = vadd.f32 %v1209, %v1316
    %v1318 = vpop.f32.mrf.mxu0
    %v1319 = vadd.f32 %v1209, %v1318
    %1320 = vdwg.mxu0
    %1321 = vmatpush.bf16.msra.mxu0 %v1290
    %1322 = vmatpush.bf16.msra.mxu0 %v1289
    %1323 = vmatpush.bf16.msra.mxu0 %v1288
    %1324 = vmatpush.bf16.msra.mxu0 %v1287
    %1325 = vmatpush.bf16.msra.mxu0 %v1286
    %1326 = vmatpush.bf16.msra.mxu0 %v1285
    %1327 = vmatpush.bf16.msra.mxu0 %v1284
    %1328 = vmatpush.bf16.msra.mxu0 %v1283
    %1329 = vmatmul.bf16.gmra.mxu0 %v1182
    %v1330 = vpop.f32.mrf.mxu0
    %v1331 = vadd.f32 %v1317, %v1330
    %v1332 = vpop.f32.mrf.mxu0
    %v1333 = vadd.f32 %v1319, %v1332
    %1334 = vdwg.mxu0
    %v1335 = vmax.f32 %v1331, 0.0
    %v1336 = vmax.f32 %v1333, 0.0
    %v1337 = vunpack.c.l.bf16 %v1108
    %v1338 = vunpack.c.l.bf16 %v1109
    %v1339 = vpack.c.bf16 %v1335, %v1335
    %v1340 = vpack.c.bf16 %v1336, %v1336
    %v1343 = vunpack.c.l.b16 %v1339
    %v1344 = vunpack.c.l.b16 %v1340
    %v1345 = vpack.c.b16 %v1344, %v1343
    %v1346 = vrot.slane %v1345, 6
    %v1348 = vsel %vm1184, 0, %v1346
    %v1350 = vsel %vm1205, %v1348, 0
    %v1368 = vunpack.c.l.b16 %v1159
    %v1369 = vunpack.c.l.b16 %v1160
    %v1370 = vunpack.c.l.b16 %v1161
    %v1371 = vunpack.c.l.b16 %v1162
    %v1372 = vunpack.c.l.b16 %v1163
    %v1373 = vunpack.c.l.b16 %v1164
    %v1374 = vunpack.c.l.b16 %v1165
    %v1375 = vunpack.c.l.b16 %v1166
    %v1376 = vunpack.c.l.b16 %v1167
    %v1377 = vunpack.c.l.b16 %v1168
    %v1378 = vunpack.c.l.b16 %v1169
    %v1379 = vunpack.c.l.b16 %v1170
    %v1380 = vunpack.c.l.b16 %v1171
    %v1381 = vunpack.c.l.b16 %v1172
    %v1382 = vunpack.c.l.b16 %v1173
    %v1383 = vunpack.c.l.b16 %v1174
    %v1384 = vpack.c.b16 %v1369, %v1368
    %v1385 = vpack.c.b16 %v1371, %v1370
    %v1386 = vpack.c.b16 %v1373, %v1372
    %v1387 = vpack.c.b16 %v1375, %v1374
    %v1388 = vpack.c.b16 %v1377, %v1376
    %v1389 = vpack.c.b16 %v1379, %v1378
    %v1390 = vpack.c.b16 %v1381, %v1380
    %v1391 = vpack.c.b16 %v1383, %v1382
    %1400 = vmatpush.bf16.msra.mxu0 %v1391
    %1401 = vmatpush.bf16.msra.mxu0 %v1390
    %1402 = vmatpush.bf16.msra.mxu0 %v1389
    %1403 = vmatpush.bf16.msra.mxu0 %v1388
    %1404 = vmatpush.bf16.msra.mxu0 %v1387
    %1405 = vmatpush.bf16.msra.mxu0 %v1386
    %1406 = vmatpush.bf16.msra.mxu0 %v1385
    %1407 = vmatpush.bf16.msra.mxu0 %v1384
    %1408 = vmatmul.bf16.gmra.mxu0 %v1345
    %v1409 = vpop.f32.mrf.mxu0
    %v1410 = vadd.f32 0.0, %v1409
    %v1411 = vpop.f32.mrf.mxu0
    %v1412 = vadd.f32 0.0, %v1411
    %1413 = vdwg.mxu0
    %v1430 = vunpack.c.l.b16 %v1143
    %v1431 = vunpack.c.l.b16 %v1144
    %v1432 = vunpack.c.l.b16 %v1145
    %v1433 = vunpack.c.l.b16 %v1146
    %v1434 = vunpack.c.l.b16 %v1147
    %v1435 = vunpack.c.l.b16 %v1148
    %v1436 = vunpack.c.l.b16 %v1149
    %v1437 = vunpack.c.l.b16 %v1150
    %v1438 = vunpack.c.l.b16 %v1151
    %v1439 = vunpack.c.l.b16 %v1152
    %v1440 = vunpack.c.l.b16 %v1153
    %v1441 = vunpack.c.l.b16 %v1154
    %v1442 = vunpack.c.l.b16 %v1155
    %v1443 = vunpack.c.l.b16 %v1156
    %v1444 = vunpack.c.l.b16 %v1157
    %v1445 = vunpack.c.l.b16 %v1158
    %v1446 = vpack.c.b16 %v1431, %v1430
    %v1447 = vpack.c.b16 %v1433, %v1432
    %v1448 = vpack.c.b16 %v1435, %v1434
    %v1449 = vpack.c.b16 %v1437, %v1436
    %v1450 = vpack.c.b16 %v1439, %v1438
    %v1451 = vpack.c.b16 %v1441, %v1440
    %v1452 = vpack.c.b16 %v1443, %v1442
    %v1453 = vpack.c.b16 %v1445, %v1444
    %1462 = vmatpush.bf16.msra.mxu0 %v1453
    %1463 = vmatpush.bf16.msra.mxu0 %v1452
    %1464 = vmatpush.bf16.msra.mxu0 %v1451
    %1465 = vmatpush.bf16.msra.mxu0 %v1450
    %1466 = vmatpush.bf16.msra.mxu0 %v1449
    %1467 = vmatpush.bf16.msra.mxu0 %v1448
    %1468 = vmatpush.bf16.msra.mxu0 %v1447
    %1469 = vmatpush.bf16.msra.mxu0 %v1446
    %1470 = vmatmul.bf16.gmra.mxu0 %v1350
    %v1471 = vpop.f32.mrf.mxu0
    %v1472 = vadd.f32 %v1410, %v1471
    %v1473 = vpop.f32.mrf.mxu0
    %v1474 = vadd.f32 %v1412, %v1473
    %1475 = vdwg.mxu0
    %v1477 = vperm.slane %v1175, 0
    %v1479 = vadd.f32 %v1472, %v1477
    %v1480 = vadd.f32 %v1474, %v1477
    %v1481 = vmax.f32 %v1479, 0.0
    %v1482 = vmax.f32 %v1480, 0.0
    %v1483 = vadd.f32 %v1481, %v1337
    %v1484 = vadd.f32 %v1482, %v1338
    %v1485 = vmax.f32 %v1483, 0.0
    %v1486 = vmax.f32 %v1484, 0.0
    %v1487 = vpack.c.bf16 %v1485, %v1485
    %v1488 = vpack.c.bf16 %v1486, %v1486
    %v1489 = vunpack.c.l.bf16 %v1487
    %v1490 = vunpack.c.l.bf16 %v1488
    %1491 = vst [vmem:[#allocation2] sm:$0xff] %v1489
    %1492 = vst [vmem:[#allocation2 + $0x8] sm:$0xff] %v1490
    %s1493 = scalar_lea.vmem [#allocation2], 7
    %v1494 = vld [vmem:[%s1493] ss:$8 sm:$0x3]
    %v1495 = vpack.c.bf16 %v1494, %v1494
    %v1496 = vld [vmem:[#allocation18] sm:$0xf]
    %v1497 = vld [vmem:[#allocation18 + $0x4] sm:$0xf]
    %v1498 = vld [vmem:[#allocation18 + $0x8] sm:$0xf]
    %v1499 = vld [vmem:[#allocation18 + $0xc] sm:$0xf]
    %v1500 = vld [vmem:[#allocation18 + $0x10] sm:$0xf]
    %v1501 = vld [vmem:[#allocation18 + $0x14] sm:$0xf]
    %v1502 = vld [vmem:[#allocation18 + $0x18] sm:$0xf]
    %v1503 = vld [vmem:[#allocation18 + $0x1c] sm:$0xf]
    %v1504 = vld [vmem:[#allocation18 + $0x20] sm:$0xf]
    %v1505 = vld [vmem:[#allocation18 + $0x24] sm:$0xf]
    %v1506 = vld [vmem:[#allocation18 + $0x28] sm:$0xf]
    %v1507 = vld [vmem:[#allocation18 + $0x2c] sm:$0xf]
    %v1508 = vld [vmem:[#allocation18 + $0x30] sm:$0xf]
    %v1509 = vld [vmem:[#allocation18 + $0x34] sm:$0xf]
    %v1510 = vld [vmem:[#allocation18 + $0x38] sm:$0xf]
    %v1511 = vld [vmem:[#allocation18 + $0x3c] sm:$0xf]
    %v1512 = vld [vmem:[%s17] sm:$0x1]
    %v1514 = vperm.slane %v1512, 0
    %v1532 = vunpack.c.l.b16 %v1496
    %v1533 = vunpack.c.l.b16 %v1497
    %v1534 = vunpack.c.l.b16 %v1498
    %v1535 = vunpack.c.l.b16 %v1499
    %v1536 = vunpack.c.l.b16 %v1500
    %v1537 = vunpack.c.l.b16 %v1501
    %v1538 = vunpack.c.l.b16 %v1502
    %v1539 = vunpack.c.l.b16 %v1503
    %v1540 = vunpack.c.l.b16 %v1504
    %v1541 = vunpack.c.l.b16 %v1505
    %v1542 = vunpack.c.l.b16 %v1506
    %v1543 = vunpack.c.l.b16 %v1507
    %v1544 = vunpack.c.l.b16 %v1508
    %v1545 = vunpack.c.l.b16 %v1509
    %v1546 = vunpack.c.l.b16 %v1510
    %v1547 = vunpack.c.l.b16 %v1511
    %v1548 = vpack.c.b16 %v1533, %v1532
    %v1549 = vpack.c.b16 %v1535, %v1534
    %v1550 = vpack.c.b16 %v1537, %v1536
    %v1551 = vpack.c.b16 %v1539, %v1538
    %v1552 = vpack.c.b16 %v1541, %v1540
    %v1553 = vpack.c.b16 %v1543, %v1542
    %v1554 = vpack.c.b16 %v1545, %v1544
    %v1555 = vpack.c.b16 %v1547, %v1546
    %1564 = vmatpush.bf16.msra.mxu0 %v1555
    %1565 = vmatpush.bf16.msra.mxu0 %v1554
    %1566 = vmatpush.bf16.msra.mxu0 %v1553
    %1567 = vmatpush.bf16.msra.mxu0 %v1552
    %1568 = vmatpush.bf16.msra.mxu0 %v1551
    %1569 = vmatpush.bf16.msra.mxu0 %v1550
    %1570 = vmatpush.bf16.msra.mxu0 %v1549
    %1571 = vmatpush.bf16.msra.mxu0 %v1548
    %1572 = vmatmul.bf16.gmra.mxu0 %v1495
    %v1573 = vpop.f32.mrf.mxu0
    %v1574 = vadd.f32 %v1514, %v1573
    %v1575 = vpop.f32.mrf.mxu0
    %1576 = vdwg.mxu0
    %v1577 = vmax.f32 %v1574, 0.0
    %v1578 = vpack.c.bf16 %v1577, %v1577
    %v1579 = vld [vmem:[#allocation20] sm:$0xf]
    %v1580 = vld [vmem:[#allocation20 + $0x4] sm:$0xf]
    %v1581 = vld [vmem:[#allocation20 + $0x8] sm:$0xf]
    %v1582 = vld [vmem:[#allocation20 + $0xc] sm:$0xf]
    %v1583 = vld [vmem:[#allocation20 + $0x10] sm:$0xf]
    %v1584 = vld [vmem:[#allocation20 + $0x14] sm:$0xf]
    %v1585 = vld [vmem:[#allocation20 + $0x18] sm:$0xf]
    %v1586 = vld [vmem:[#allocation20 + $0x1c] sm:$0xf]
    %v1587 = vld [vmem:[#allocation20 + $0x20] sm:$0xf]
    %v1588 = vld [vmem:[#allocation20 + $0x24] sm:$0xf]
    %v1589 = vld [vmem:[#allocation20 + $0x28] sm:$0xf]
    %v1590 = vld [vmem:[#allocation20 + $0x2c] sm:$0xf]
    %v1591 = vld [vmem:[#allocation20 + $0x30] sm:$0xf]
    %v1592 = vld [vmem:[#allocation20 + $0x34] sm:$0xf]
    %v1593 = vld [vmem:[#allocation20 + $0x38] sm:$0xf]
    %v1594 = vld [vmem:[#allocation20 + $0x3c] sm:$0xf]
    %v1595 = vld [vmem:[%s19] sm:$0x1]
    %v1597 = vperm.slane %v1595, 0
    %v1615 = vunpack.c.l.b16 %v1579
    %v1616 = vunpack.c.l.b16 %v1580
    %v1617 = vunpack.c.l.b16 %v1581
    %v1618 = vunpack.c.l.b16 %v1582
    %v1619 = vunpack.c.l.b16 %v1583
    %v1620 = vunpack.c.l.b16 %v1584
    %v1621 = vunpack.c.l.b16 %v1585
    %v1622 = vunpack.c.l.b16 %v1586
    %v1623 = vunpack.c.l.b16 %v1587
    %v1624 = vunpack.c.l.b16 %v1588
    %v1625 = vunpack.c.l.b16 %v1589
    %v1626 = vunpack.c.l.b16 %v1590
    %v1627 = vunpack.c.l.b16 %v1591
    %v1628 = vunpack.c.l.b16 %v1592
    %v1629 = vunpack.c.l.b16 %v1593
    %v1630 = vunpack.c.l.b16 %v1594
    %v1631 = vpack.c.b16 %v1616, %v1615
    %v1632 = vpack.c.b16 %v1618, %v1617
    %v1633 = vpack.c.b16 %v1620, %v1619
    %v1634 = vpack.c.b16 %v1622, %v1621
    %v1635 = vpack.c.b16 %v1624, %v1623
    %v1636 = vpack.c.b16 %v1626, %v1625
    %v1637 = vpack.c.b16 %v1628, %v1627
    %v1638 = vpack.c.b16 %v1630, %v1629
    %1647 = vmatpush.bf16.msra.mxu0 %v1638
    %1648 = vmatpush.bf16.msra.mxu0 %v1637
    %1649 = vmatpush.bf16.msra.mxu0 %v1636
    %1650 = vmatpush.bf16.msra.mxu0 %v1635
    %1651 = vmatpush.bf16.msra.mxu0 %v1634
    %1652 = vmatpush.bf16.msra.mxu0 %v1633
    %1653 = vmatpush.bf16.msra.mxu0 %v1632
    %1654 = vmatpush.bf16.msra.mxu0 %v1631
    %1655 = vmatmul.bf16.gmra.mxu0 %v1578
    %v1656 = vpop.f32.mrf.mxu0
    %v1657 = vadd.f32 %v1597, %v1656
    %v1658 = vpop.f32.mrf.mxu0
    %1659 = vdwg.mxu0
    %1660 = vst [vmem:[#allocation21] sm:$0x3] %v1657
    // Predicated region
    $region126: #{_lambda_.1} parent=1 // pred_check
      _
    $region127: #{_lambda_.1} parent=1 // pred_check_branch
      %1662 = sbr.rel (0) target = $region129
    $region128: #{_lambda_.1} parent=1 // pred_region
      %1664 = vsyncadd [#allocation5], 0
      %s1666 = sshll.u32 [#allocation21], 4
      %s1667 = int_to_ptr.vmem [resolvable:$true] %s1666
      %s1668 = sshll.u32 %s20, 4
      %s1669 = int_to_ptr.hbm [resolvable:$true] %s1668
      %1671 = dma.vmem_to_hbm [thread:$0]  %s1667, 32, %s1669, [#allocation5]
    $region129: #{_lambda_.1} parent=1 // pred_fallthru
      _
    // Predicated region
    $region130: #{_lambda_.1} parent=1 // pred_check
      _
    $region131: #{_lambda_.1} parent=1 // pred_check_branch
      %1673 = sbr.rel (0) target = $region133
    $region132: #{_lambda_.1} parent=1 // pred_region
      %1675 = dma.done [#allocation5], 32
    $region133: #{_lambda_.1} parent=1 // pred_fallthru
      _
    %1676 = vsyncpa [#allocation4], 1
    %1677 = vsyncpa [#allocation7], 1
    %1678 = vsyncpa [#allocation10], 1
    %1679 = vsyncpa [#allocation13], 1
    %1680 = vsyncpa [#allocation16], 1
    %1681 = vsyncpa [#allocation19], 1
    %1682 = vsyncpa [#allocation5], 1

</llo_original>
